<compile_context>
chip_gen: v7x
topology: tpu7x:2x2x1
jax: 0.10.0
libtpu: 0.0.40
codegen_flags: <defaults>
</compile_context>

<pallas_src>
import functools

import numpy as np

import jax
import jax.numpy as jnp
from jax.experimental import pallas as pl
from jax.experimental.pallas import tpu as pltpu


# ----------------------------------------------------------------------------
# Fused kernel: 1x1 q/k/v projection + per-pixel, per-channel attention over the
# k x k neighborhood, two-pass softmax, in-kernel boundary masks.
#   logits[c, p, t] = q[c, p] * (k_shift_t[c, p] + rel[c, t])
#   out[c, p]       = sum_t softmax_t(logits)[c, p, t] * v_shift_t[c, p]
# Layout: channels (chunk) on sublanes, flattened H*W on lanes.
# ----------------------------------------------------------------------------
def _attention_conv_kernel(x_ref, wq_ref, wk_ref, wv_ref, rel_ref, hw_ref, o_ref, *,
                           c_in, ksize, height, width, padding, n_pad, b_tile):
    f32 = jnp.float32
    wq = wq_ref[...]                        # (Cc, C_in) f32
    wk = wk_ref[...]
    wv = wv_ref[...]
    rel = rel_ref[...]                      # (Cc, k*k) f32
    h_idx = hw_ref[0:1, :]                  # (1, n) int32 row index (pad tail = sentinel)
    w_idx = hw_ref[1:2, :]                  # (1, n) int32 col index

    kk = ksize * ksize

    # In-kernel tap validity (replaces the old (k*k, n) f32 mask DMA): a handful of
    # (1, n) integer compares/ANDs, negligible next to the (Cc, n) slab math.
    valid_h = [(h_idx >= (padding - dh)) & (h_idx < (height + padding - dh))
               for dh in range(ksize)]
    valid_w = [(w_idx >= (padding - dw)) & (w_idx < (width + padding - dw))
               for dw in range(ksize)]

    use_mxu = c_in >= 16                    # MXU is idle in this kernel; use it once
                                            # C_in is big enough to matter.

    for b in range(b_tile):
        x = x_ref[b].astype(f32)            # (C_in, n); upcast once, math stays f32

        # ---- fused 1x1 q/k/v projection ------------------------------------
        if use_mxu:
            q = jnp.dot(wq, x, preferred_element_type=f32)        # (Cc, n)
            k_all = jnp.dot(wk, x, preferred_element_type=f32)
            v_all = jnp.dot(wv, x, preferred_element_type=f32)
        else:
            # Tiny C_in: VPU broadcast-MAC with three separate accumulators
            # (no slicing of a fused qkv slab across sublane tiles).
            q = k_all = v_all = None
            for ci in range(c_in):
                xc = x[ci:ci + 1, :]                              # (1, n)
                tq = wq[:, ci:ci + 1] * xc                        # (Cc, n)
                tk = wk[:, ci:ci + 1] * xc
                tv = wv[:, ci:ci + 1] * xc
                q = tq if q is None else q + tq
                k_all = tk if k_all is None else k_all + tk
                v_all = tv if v_all is None else v_all + tv

        # ---- pass 1: per-tap logits (cached) + running max (no exp) ---------
        logits = []
        vals = []
        m = None
        t = 0
        for dh in range(ksize):
            for dw in range(ksize):
                s = (dh - padding) * width + (dw - padding)
                shift = (-s) % n_pad
                if shift == 0:
                    k_t, v_t = k_all, v_all
                else:
                    k_t = pltpu.roll(k_all, shift, axis=1)        # XLU slot (otherwise idle)
                    v_t = pltpu.roll(v_all, shift, axis=1)
                valid = valid_h[dh] & valid_w[dw]                 # (1, n) bool
                k_t = jnp.where(valid, k_t, 0.0)                  # zero-padded conv (bias=False)
                v_t = jnp.where(valid, v_t, 0.0)
                logit = q * (k_t + rel[:, t:t + 1])
                logits.append(logit)
                vals.append(v_t)
                m = logit if m is None else jnp.maximum(m, logit)
                t += 1

        # ---- pass 2: exactly k*k exps, no per-tap rescale chain --------------
        den = None
        num = None
        for t in range(kk):
            p = jnp.exp(logits[t] - m)
            pv = p * vals[t]
            den = p if den is None else den + p
            num = pv if num is None else num + pv

        inv = pl.reciprocal(den, approx=True)   # EUP vrcp instead of a serializing divide
        inv = inv * (2.0 - den * inv)           # one Newton step -> ~f32-exact normalization
        o_ref[b] = (num * inv).astype(o_ref.dtype)


# ----------------------------------------------------------------------------
# Tiling heuristics.
# ----------------------------------------------------------------------------
def _pick_channel_chunk(c_out, target=64):
    """Largest channel chunk <= target that divides C_out and keeps sublane tiling."""
    if c_out <= target:
        return c_out
    for cand in range(target, 7, -1):
        if cand % 8 == 0 and c_out % cand == 0:
            return cand
    return c_out


def _pick_batch_tile(batch, c_chunk, n_pad, ksize, budget_elems=2_000_000):
    """Pack batches per grid step (amortize per-step overhead) within a VMEM budget."""
    per_batch = (6 + 2 * ksize * ksize) * c_chunk * n_pad   # q/k/v/m/den/num + tap caches
    bt = max(1, min(batch, budget_elems // max(per_batch, 1)))
    while batch % bt:
        bt -= 1
    return max(bt, 1)


# ----------------------------------------------------------------------------
# Wrapper: x (B, C_in, H, W) NCHW -> (B, C_out, H, W), matching the PyTorch module.
# ----------------------------------------------------------------------------
def attention_conv(x, wq, wk, wv, rel_h, rel_w, *, kernel_size, stride=1, padding=0,
                   groups=1, io_dtype=jnp.float32):
    assert stride == 1, "kernel written for stride=1"
    B, C_in, H, W = x.shape
    C_out = wq.shape[0]
    # `groups` only drives a view/reshape in the PyTorch forward; the per-channel
    # attention math is identical for any groups.
    assert C_out % groups == 0
    k = kernel_size
    assert 2 * padding == k - 1, "module assumes output HxW == input HxW"

    n = H * W
    n_pad = ((n + 127) // 128) * 128        # lane-dense spatial axis (multiple of 128)

    # NCHW already has spatial innermost -> flatten is a free reshape; pad lane tail.
    x_flat = x.reshape(B, C_in, n)
    if n_pad != n:
        x_flat = jnp.pad(x_flat, ((0, 0), (0, 0), (0, n_pad - n)))
    x_flat = x_flat.astype(io_dtype)        # cast activations only; weights stay f32

    wq2 = wq.reshape(C_out, C_in).astype(jnp.float32)
    wk2 = wk.reshape(C_out, C_in).astype(jnp.float32)
    wv2 = wv.reshape(C_out, C_in).astype(jnp.float32)

    # Relative-position table per (channel, tap): tap t = dh*k + dw,
    # first C_out//2 channels use rel_h[dh], the rest use rel_w[dw].
    half = C_out // 2
    rel_dh = jnp.repeat(rel_h.reshape(k), k)
    rel_dw = jnp.tile(rel_w.reshape(k), k)
    rel_tab = jnp.concatenate(
        [jnp.broadcast_to(rel_dh[None, :], (half, k * k)),
         jnp.broadcast_to(rel_dw[None, :], (C_out - half, k * k))],
        axis=0).astype(jnp.float32)                                  # (C_out, k*k)

    # Two int32 index rows (h, w) per flattened position; pad-tail lanes carry an
    # always-invalid sentinel.  Replaces the old (k*k, n_pad) f32 mask input.
    j = np.arange(n_pad)
    h_row = np.where(j < n, j // W, -(1 << 20)).astype(np.int32)
    w_row = np.where(j < n, j % W, -(1 << 20)).astype(np.int32)
    hw_idx = jnp.asarray(np.stack([h_row, w_row], axis=0))           # (2, n_pad) int32

    Cc = _pick_channel_chunk(C_out)
    Bt = _pick_batch_tile(B, Cc, n_pad, k)
    grid = (B // Bt, C_out // Cc)           # both axes fully parallel (no reduction)

    # Explicit scoped-VMEM budget derived from the tiling (review item for v7x).
    io_bytes = jnp.dtype(io_dtype).itemsize
    est = (2 * (Bt * C_in * n_pad * io_bytes          # x block (double-buffered)
                + Bt * Cc * n_pad * 4                 # output block
                + 2 * n_pad * 4                       # hw index rows
                + (3 * C_in + k * k) * Cc * 4)        # weights + rel table
           + (6 + 2 * k * k) * Cc * n_pad * 4)        # in-kernel live slabs (one batch)
    vmem_limit = int(min(max(2 * est, 32 << 20), 64 << 20))

    kern = functools.partial(_attention_conv_kernel,
                             c_in=C_in, ksize=k, height=H, width=W,
                             padding=padding, n_pad=n_pad, b_tile=Bt)

    out_flat = pl.pallas_call(
        kern,
        out_shape=jax.ShapeDtypeStruct((B, C_out, n_pad), jnp.float32),
        grid=grid,
        in_specs=[
            pl.BlockSpec((Bt, C_in, n_pad), lambda bi, cj: (bi, 0, 0)),   # x (resident over cj)
            pl.BlockSpec((Cc, C_in), lambda bi, cj: (cj, 0)),             # wq chunk
            pl.BlockSpec((Cc, C_in), lambda bi, cj: (cj, 0)),             # wk chunk
            pl.BlockSpec((Cc, C_in), lambda bi, cj: (cj, 0)),             # wv chunk
            pl.BlockSpec((Cc, k * k), lambda bi, cj: (cj, 0)),            # rel table chunk
            pl.BlockSpec((2, n_pad), lambda bi, cj: (0, 0)),              # (h, w) index rows
        ],
        out_specs=pl.BlockSpec((Bt, Cc, n_pad), lambda bi, cj: (bi, cj, 0)),
        compiler_params=pltpu.CompilerParams(
            dimension_semantics=("parallel", "parallel"),
            vmem_limit_bytes=vmem_limit),
    )(x_flat, wq2, wk2, wv2, rel_tab, hw_idx)

    # Drop the lane-padding tail and restore NCHW (pure reshape, no transpose pass).
    return out_flat[:, :, :n].reshape(B, C_out, H, W)


# ----------------------------------------------------------------------------
# Pure-JAX reference (mirrors the PyTorch forward), for the correctness check.
# ----------------------------------------------------------------------------
def attention_conv_ref(x, wq, wk, wv, rel_h, rel_w, *, kernel_size, padding):
    B, C_in, H, W = x.shape
    C_out = wq.shape[0]
    k = kernel_size
    xp = jnp.pad(x, ((0, 0), (0, 0), (padding, padding), (padding, padding)))

    def conv1x1(t, w):
        return jnp.einsum('bchw,oc->bohw', t, w.reshape(C_out, C_in),
                          precision=jax.lax.Precision.HIGHEST)

    q = conv1x1(x, wq)
    kk = conv1x1(xp, wk)
    vv = conv1x1(xp, wv)

    def unfold(t):  # (B, C, Hp, Wp) -> (B, C, H, W, k, k)
        rows = []
        for dh in range(k):
            cols = [t[:, :, dh:dh + H, dw:dw + W] for dw in range(k)]
            rows.append(jnp.stack(cols, axis=-1))
        return jnp.stack(rows, axis=-2)

    ku = unfold(kk)
    vu = unfold(vv)
    half = C_out // 2
    ku = jnp.concatenate(
        [ku[:, :half] + rel_h.reshape(1, 1, 1, 1, k, 1),
         ku[:, half:] + rel_w.reshape(1, 1, 1, 1, 1, k)], axis=1)
    ku = ku.reshape(B, C_out, H, W, k * k)
    vu = vu.reshape(B, C_out, H, W, k * k)
    logits = q[..., None] * ku
    w = jax.nn.softmax(logits, axis=-1)
    return (w * vu).sum(-1)


if __name__ == "__main__":
    B, C_in, C_out = 2, 4, 8
    H = W = 16
    kernel_size, stride, padding, groups = 3, 1, 1, 2

    key = jax.random.PRNGKey(0)
    kx, kq, kk_, kv, krh, krw = jax.random.split(key, 6)

    x = jax.random.normal(kx, (B, C_in, H, W), dtype=jnp.float32)

    # Kaiming normal, mode='fan_out', nonlinearity='relu' for 1x1 convs.
    std = (2.0 / C_out) ** 0.5
    wq = std * jax.random.normal(kq, (C_out, C_in, 1, 1), dtype=jnp.float32)
    wk = std * jax.random.normal(kk_, (C_out, C_in, 1, 1), dtype=jnp.float32)
    wv = std * jax.random.normal(kv, (C_out, C_in, 1, 1), dtype=jnp.float32)
    rel_h = jax.random.normal(krh, (kernel_size,), dtype=jnp.float32)
    rel_w = jax.random.normal(krw, (kernel_size,), dtype=jnp.float32)

    ref = attention_conv_ref(x, wq, wk, wv, rel_h, rel_w,
                             kernel_size=kernel_size, padding=padding)
    ref = jax.block_until_ready(ref)

    # f32 I/O path (v5e default): tight vs the reference.
    out = attention_conv(x, wq, wk, wv, rel_h, rel_w,
                         kernel_size=kernel_size, stride=stride,
                         padding=padding, groups=groups)
    out = jax.block_until_ready(out)
    assert out.shape == (B, C_out, H, W), out.shape
    assert jnp.allclose(out, ref, atol=5e-5, rtol=5e-5), \
        float(jnp.max(jnp.abs(out - ref)))

    # bf16 activation-I/O path (v6e/v7x): weights stay f32, softmax math stays f32,
    # so only input-rounding error remains.
    out_bf16 = attention_conv(x, wq, wk, wv, rel_h, rel_w,
                              kernel_size=kernel_size, stride=stride,
                              padding=padding, groups=groups,
                              io_dtype=jnp.bfloat16)
    out_bf16 = jax.block_until_ready(out_bf16)
    assert jnp.allclose(out_bf16, ref, atol=1e-1, rtol=1e-1), \
        float(jnp.max(jnp.abs(out_bf16 - ref)))

    print("KERNEL_OK")
</pallas_src>

<mosaic_0001>
module attributes {stable_mosaic.version = 11 : i64} {
  func.func @_attention_conv_kernel(%arg0: i32, %arg1: i32, %arg2: memref<2x4x256xf32, #tpu.memory_space<vmem>>, %arg3: memref<8x4xf32, #tpu.memory_space<vmem>>, %arg4: memref<8x4xf32, #tpu.memory_space<vmem>>, %arg5: memref<8x4xf32, #tpu.memory_space<vmem>>, %arg6: memref<8x9xf32, #tpu.memory_space<vmem>>, %arg7: memref<2x256xi32, #tpu.memory_space<vmem>>, %arg8: memref<2x8x256xf32, #tpu.memory_space<vmem>>) attributes {dimension_semantics = [#tpu.dimension_semantics<parallel>, #tpu.dimension_semantics<parallel>], iteration_bounds = array<i64: 1, 1>, scalar_prefetch = 0 : i64, scratch_operands = 0 : i64, tpu.core_type = #tpu.core_type<tc>, window_params = [{transform_indices = @transform_0, window_bounds = array<i64: 2, 4, 256>}, {transform_indices = @transform_1, window_bounds = array<i64: 8, 4>}, {transform_indices = @transform_2, window_bounds = array<i64: 8, 4>}, {transform_indices = @transform_3, window_bounds = array<i64: 8, 4>}, {transform_indices = @transform_4, window_bounds = array<i64: 8, 9>}, {pipeline_mode = #tpu.pipeline_mode<synchronous>, transform_indices = @transform_5, window_bounds = array<i64: 2, 256>}, {transform_indices = @transform_6, window_bounds = array<i64: 2, 8, 256>}]} {
    %c0 = arith.constant 0 : index
    %c0_0 = arith.constant 0 : index
    %0 = vector.load %arg3[%c0, %c0_0] : memref<8x4xf32, #tpu.memory_space<vmem>>, vector<8x4xf32>
    %c0_1 = arith.constant 0 : index
    %c0_2 = arith.constant 0 : index
    %1 = vector.load %arg4[%c0_1, %c0_2] : memref<8x4xf32, #tpu.memory_space<vmem>>, vector<8x4xf32>
    %c0_3 = arith.constant 0 : index
    %c0_4 = arith.constant 0 : index
    %2 = vector.load %arg5[%c0_3, %c0_4] : memref<8x4xf32, #tpu.memory_space<vmem>>, vector<8x4xf32>
    %c0_5 = arith.constant 0 : index
    %c0_6 = arith.constant 0 : index
    %3 = vector.load %arg6[%c0_5, %c0_6] : memref<8x9xf32, #tpu.memory_space<vmem>>, vector<8x9xf32>
    %c0_7 = arith.constant 0 : index
    %c0_8 = arith.constant 0 : index
    %4 = vector.load %arg7[%c0_7, %c0_8] : memref<2x256xi32, #tpu.memory_space<vmem>>, vector<1x256xi32>
    %c1 = arith.constant 1 : index
    %c0_9 = arith.constant 0 : index
    %5 = vector.load %arg7[%c1, %c0_9] : memref<2x256xi32, #tpu.memory_space<vmem>>, vector<1x256xi32>
    %c1_i32 = arith.constant 1 : i32
    %6 = vector.broadcast %c1_i32 : i32 to vector<1x256xi32>
    %7 = arith.cmpi sge, %4, %6 : vector<1x256xi32>
    %c17_i32 = arith.constant 17 : i32
    %8 = vector.broadcast %c17_i32 : i32 to vector<1x256xi32>
    %9 = arith.cmpi slt, %4, %8 : vector<1x256xi32>
    %10 = arith.andi %7, %9 : vector<1x256xi1>
    %c0_i32 = arith.constant 0 : i32
    %11 = vector.broadcast %c0_i32 : i32 to vector<1x256xi32>
    %12 = arith.cmpi sge, %4, %11 : vector<1x256xi32>
    %c16_i32 = arith.constant 16 : i32
    %13 = vector.broadcast %c16_i32 : i32 to vector<1x256xi32>
    %14 = arith.cmpi slt, %4, %13 : vector<1x256xi32>
    %15 = arith.andi %12, %14 : vector<1x256xi1>
    %c-1_i32 = arith.constant -1 : i32
    %16 = vector.broadcast %c-1_i32 : i32 to vector<1x256xi32>
    %17 = arith.cmpi sge, %4, %16 : vector<1x256xi32>
    %c15_i32 = arith.constant 15 : i32
    %18 = vector.broadcast %c15_i32 : i32 to vector<1x256xi32>
    %19 = arith.cmpi slt, %4, %18 : vector<1x256xi32>
    %20 = arith.andi %17, %19 : vector<1x256xi1>
    %c1_i32_10 = arith.constant 1 : i32
    %21 = vector.broadcast %c1_i32_10 : i32 to vector<1x256xi32>
    %22 = arith.cmpi sge, %5, %21 : vector<1x256xi32>
    %c17_i32_11 = arith.constant 17 : i32
    %23 = vector.broadcast %c17_i32_11 : i32 to vector<1x256xi32>
    %24 = arith.cmpi slt, %5, %23 : vector<1x256xi32>
    %25 = arith.andi %22, %24 : vector<1x256xi1>
    %c0_i32_12 = arith.constant 0 : i32
    %26 = vector.broadcast %c0_i32_12 : i32 to vector<1x256xi32>
    %27 = arith.cmpi sge, %5, %26 : vector<1x256xi32>
    %c16_i32_13 = arith.constant 16 : i32
    %28 = vector.broadcast %c16_i32_13 : i32 to vector<1x256xi32>
    %29 = arith.cmpi slt, %5, %28 : vector<1x256xi32>
    %30 = arith.andi %27, %29 : vector<1x256xi1>
    %c-1_i32_14 = arith.constant -1 : i32
    %31 = vector.broadcast %c-1_i32_14 : i32 to vector<1x256xi32>
    %32 = arith.cmpi sge, %5, %31 : vector<1x256xi32>
    %c15_i32_15 = arith.constant 15 : i32
    %33 = vector.broadcast %c15_i32_15 : i32 to vector<1x256xi32>
    %34 = arith.cmpi slt, %5, %33 : vector<1x256xi32>
    %35 = arith.andi %32, %34 : vector<1x256xi1>
    %c0_16 = arith.constant 0 : index
    %c0_17 = arith.constant 0 : index
    %c0_18 = arith.constant 0 : index
    %36 = vector.load %arg2[%c0_16, %c0_17, %c0_18] : memref<2x4x256xf32, #tpu.memory_space<vmem>>, vector<1x4x256xf32>
    %37 = vector.shape_cast %36 : vector<1x4x256xf32> to vector<4x256xf32>
    %38 = vector.extract_strided_slice %37 {offsets = [0, 0], sizes = [1, 256], strides = [1, 1]} : vector<4x256xf32> to vector<1x256xf32>
    %39 = vector.extract_strided_slice %0 {offsets = [0, 0], sizes = [8, 1], strides = [1, 1]} : vector<8x4xf32> to vector<8x1xf32>
    %40 = vector.broadcast %39 : vector<8x1xf32> to vector<8x256xf32>
    %41 = vector.broadcast %38 : vector<1x256xf32> to vector<8x256xf32>
    %42 = arith.mulf %40, %41 : vector<8x256xf32>
    %43 = vector.extract_strided_slice %1 {offsets = [0, 0], sizes = [8, 1], strides = [1, 1]} : vector<8x4xf32> to vector<8x1xf32>
    %44 = vector.broadcast %43 : vector<8x1xf32> to vector<8x256xf32>
    %45 = vector.broadcast %38 : vector<1x256xf32> to vector<8x256xf32>
    %46 = arith.mulf %44, %45 : vector<8x256xf32>
    %47 = vector.extract_strided_slice %2 {offsets = [0, 0], sizes = [8, 1], strides = [1, 1]} : vector<8x4xf32> to vector<8x1xf32>
    %48 = vector.broadcast %47 : vector<8x1xf32> to vector<8x256xf32>
    %49 = vector.broadcast %38 : vector<1x256xf32> to vector<8x256xf32>
    %50 = arith.mulf %48, %49 : vector<8x256xf32>
    %51 = vector.extract_strided_slice %37 {offsets = [1, 0], sizes = [1, 256], strides = [1, 1]} : vector<4x256xf32> to vector<1x256xf32>
    %52 = vector.extract_strided_slice %0 {offsets = [0, 1], sizes = [8, 1], strides = [1, 1]} : vector<8x4xf32> to vector<8x1xf32>
    %53 = vector.broadcast %52 : vector<8x1xf32> to vector<8x256xf32>
    %54 = vector.broadcast %51 : vector<1x256xf32> to vector<8x256xf32>
    %55 = arith.mulf %53, %54 : vector<8x256xf32>
    %56 = vector.extract_strided_slice %1 {offsets = [0, 1], sizes = [8, 1], strides = [1, 1]} : vector<8x4xf32> to vector<8x1xf32>
    %57 = vector.broadcast %56 : vector<8x1xf32> to vector<8x256xf32>
    %58 = vector.broadcast %51 : vector<1x256xf32> to vector<8x256xf32>
    %59 = arith.mulf %57, %58 : vector<8x256xf32>
    %60 = vector.extract_strided_slice %2 {offsets = [0, 1], sizes = [8, 1], strides = [1, 1]} : vector<8x4xf32> to vector<8x1xf32>
    %61 = vector.broadcast %60 : vector<8x1xf32> to vector<8x256xf32>
    %62 = vector.broadcast %51 : vector<1x256xf32> to vector<8x256xf32>
    %63 = arith.mulf %61, %62 : vector<8x256xf32>
    %64 = arith.addf %42, %55 : vector<8x256xf32>
    %65 = arith.addf %46, %59 : vector<8x256xf32>
    %66 = arith.addf %50, %63 : vector<8x256xf32>
    %67 = vector.extract_strided_slice %37 {offsets = [2, 0], sizes = [1, 256], strides = [1, 1]} : vector<4x256xf32> to vector<1x256xf32>
    %68 = vector.extract_strided_slice %0 {offsets = [0, 2], sizes = [8, 1], strides = [1, 1]} : vector<8x4xf32> to vector<8x1xf32>
    %69 = vector.broadcast %68 : vector<8x1xf32> to vector<8x256xf32>
    %70 = vector.broadcast %67 : vector<1x256xf32> to vector<8x256xf32>
    %71 = arith.mulf %69, %70 : vector<8x256xf32>
    %72 = vector.extract_strided_slice %1 {offsets = [0, 2], sizes = [8, 1], strides = [1, 1]} : vector<8x4xf32> to vector<8x1xf32>
    %73 = vector.broadcast %72 : vector<8x1xf32> to vector<8x256xf32>
    %74 = vector.broadcast %67 : vector<1x256xf32> to vector<8x256xf32>
    %75 = arith.mulf %73, %74 : vector<8x256xf32>
    %76 = vector.extract_strided_slice %2 {offsets = [0, 2], sizes = [8, 1], strides = [1, 1]} : vector<8x4xf32> to vector<8x1xf32>
    %77 = vector.broadcast %76 : vector<8x1xf32> to vector<8x256xf32>
    %78 = vector.broadcast %67 : vector<1x256xf32> to vector<8x256xf32>
    %79 = arith.mulf %77, %78 : vector<8x256xf32>
    %80 = arith.addf %64, %71 : vector<8x256xf32>
    %81 = arith.addf %65, %75 : vector<8x256xf32>
    %82 = arith.addf %66, %79 : vector<8x256xf32>
    %83 = vector.extract_strided_slice %37 {offsets = [3, 0], sizes = [1, 256], strides = [1, 1]} : vector<4x256xf32> to vector<1x256xf32>
    %84 = vector.extract_strided_slice %0 {offsets = [0, 3], sizes = [8, 1], strides = [1, 1]} : vector<8x4xf32> to vector<8x1xf32>
    %85 = vector.broadcast %84 : vector<8x1xf32> to vector<8x256xf32>
    %86 = vector.broadcast %83 : vector<1x256xf32> to vector<8x256xf32>
    %87 = arith.mulf %85, %86 : vector<8x256xf32>
    %88 = vector.extract_strided_slice %1 {offsets = [0, 3], sizes = [8, 1], strides = [1, 1]} : vector<8x4xf32> to vector<8x1xf32>
    %89 = vector.broadcast %88 : vector<8x1xf32> to vector<8x256xf32>
    %90 = vector.broadcast %83 : vector<1x256xf32> to vector<8x256xf32>
    %91 = arith.mulf %89, %90 : vector<8x256xf32>
    %92 = vector.extract_strided_slice %2 {offsets = [0, 3], sizes = [8, 1], strides = [1, 1]} : vector<8x4xf32> to vector<8x1xf32>
    %93 = vector.broadcast %92 : vector<8x1xf32> to vector<8x256xf32>
    %94 = vector.broadcast %83 : vector<1x256xf32> to vector<8x256xf32>
    %95 = arith.mulf %93, %94 : vector<8x256xf32>
    %96 = arith.addf %80, %87 : vector<8x256xf32>
    %97 = arith.addf %81, %91 : vector<8x256xf32>
    %98 = arith.addf %82, %95 : vector<8x256xf32>
    %c17_i32_19 = arith.constant 17 : i32
    %99 = tpu.dynamic_rotate %97 by %c17_i32_19 dim 1 : vector<8x256xf32>, i32 -> vector<8x256xf32>
    %c17_i32_20 = arith.constant 17 : i32
    %100 = tpu.dynamic_rotate %98 by %c17_i32_20 dim 1 : vector<8x256xf32>, i32 -> vector<8x256xf32>
    %101 = arith.andi %10, %25 : vector<1x256xi1>
    %cst = arith.constant 0.000000e+00 : f32
    %102 = vector.shape_cast %101 : vector<1x256xi1> to vector<1x256xi1>
    %103 = vector.broadcast %102 : vector<1x256xi1> to vector<8x256xi1>
    %104 = vector.broadcast %cst : f32 to vector<8x256xf32>
    %105 = arith.select %103, %99, %104 : vector<8x256xi1>, vector<8x256xf32>
    %cst_21 = arith.constant 0.000000e+00 : f32
    %106 = vector.shape_cast %101 : vector<1x256xi1> to vector<1x256xi1>
    %107 = vector.broadcast %106 : vector<1x256xi1> to vector<8x256xi1>
    %108 = vector.broadcast %cst_21 : f32 to vector<8x256xf32>
    %109 = arith.select %107, %100, %108 : vector<8x256xi1>, vector<8x256xf32>
    %110 = vector.extract_strided_slice %3 {offsets = [0, 0], sizes = [8, 1], strides = [1, 1]} : vector<8x9xf32> to vector<8x1xf32>
    %111 = vector.broadcast %110 : vector<8x1xf32> to vector<8x256xf32>
    %112 = arith.addf %105, %111 : vector<8x256xf32>
    %113 = arith.mulf %96, %112 : vector<8x256xf32>
    %c16_i32_22 = arith.constant 16 : i32
    %114 = tpu.dynamic_rotate %97 by %c16_i32_22 dim 1 : vector<8x256xf32>, i32 -> vector<8x256xf32>
    %c16_i32_23 = arith.constant 16 : i32
    %115 = tpu.dynamic_rotate %98 by %c16_i32_23 dim 1 : vector<8x256xf32>, i32 -> vector<8x256xf32>
    %116 = arith.andi %10, %30 : vector<1x256xi1>
    %cst_24 = arith.constant 0.000000e+00 : f32
    %117 = vector.shape_cast %116 : vector<1x256xi1> to vector<1x256xi1>
    %118 = vector.broadcast %117 : vector<1x256xi1> to vector<8x256xi1>
    %119 = vector.broadcast %cst_24 : f32 to vector<8x256xf32>
    %120 = arith.select %118, %114, %119 : vector<8x256xi1>, vector<8x256xf32>
    %cst_25 = arith.constant 0.000000e+00 : f32
    %121 = vector.shape_cast %116 : vector<1x256xi1> to vector<1x256xi1>
    %122 = vector.broadcast %121 : vector<1x256xi1> to vector<8x256xi1>
    %123 = vector.broadcast %cst_25 : f32 to vector<8x256xf32>
    %124 = arith.select %122, %115, %123 : vector<8x256xi1>, vector<8x256xf32>
    %125 = vector.extract_strided_slice %3 {offsets = [0, 1], sizes = [8, 1], strides = [1, 1]} : vector<8x9xf32> to vector<8x1xf32>
    %126 = vector.broadcast %125 : vector<8x1xf32> to vector<8x256xf32>
    %127 = arith.addf %120, %126 : vector<8x256xf32>
    %128 = arith.mulf %96, %127 : vector<8x256xf32>
    %129 = arith.maximumf %113, %128 : vector<8x256xf32>
    %c15_i32_26 = arith.constant 15 : i32
    %130 = tpu.dynamic_rotate %97 by %c15_i32_26 dim 1 : vector<8x256xf32>, i32 -> vector<8x256xf32>
    %c15_i32_27 = arith.constant 15 : i32
    %131 = tpu.dynamic_rotate %98 by %c15_i32_27 dim 1 : vector<8x256xf32>, i32 -> vector<8x256xf32>
    %132 = arith.andi %10, %35 : vector<1x256xi1>
    %cst_28 = arith.constant 0.000000e+00 : f32
    %133 = vector.shape_cast %132 : vector<1x256xi1> to vector<1x256xi1>
    %134 = vector.broadcast %133 : vector<1x256xi1> to vector<8x256xi1>
    %135 = vector.broadcast %cst_28 : f32 to vector<8x256xf32>
    %136 = arith.select %134, %130, %135 : vector<8x256xi1>, vector<8x256xf32>
    %cst_29 = arith.constant 0.000000e+00 : f32
    %137 = vector.shape_cast %132 : vector<1x256xi1> to vector<1x256xi1>
    %138 = vector.broadcast %137 : vector<1x256xi1> to vector<8x256xi1>
    %139 = vector.broadcast %cst_29 : f32 to vector<8x256xf32>
    %140 = arith.select %138, %131, %139 : vector<8x256xi1>, vector<8x256xf32>
    %141 = vector.extract_strided_slice %3 {offsets = [0, 2], sizes = [8, 1], strides = [1, 1]} : vector<8x9xf32> to vector<8x1xf32>
    %142 = vector.broadcast %141 : vector<8x1xf32> to vector<8x256xf32>
    %143 = arith.addf %136, %142 : vector<8x256xf32>
    %144 = arith.mulf %96, %143 : vector<8x256xf32>
    %145 = arith.maximumf %129, %144 : vector<8x256xf32>
    %c1_i32_30 = arith.constant 1 : i32
    %146 = tpu.dynamic_rotate %97 by %c1_i32_30 dim 1 : vector<8x256xf32>, i32 -> vector<8x256xf32>
    %c1_i32_31 = arith.constant 1 : i32
    %147 = tpu.dynamic_rotate %98 by %c1_i32_31 dim 1 : vector<8x256xf32>, i32 -> vector<8x256xf32>
    %148 = arith.andi %15, %25 : vector<1x256xi1>
    %cst_32 = arith.constant 0.000000e+00 : f32
    %149 = vector.shape_cast %148 : vector<1x256xi1> to vector<1x256xi1>
    %150 = vector.broadcast %149 : vector<1x256xi1> to vector<8x256xi1>
    %151 = vector.broadcast %cst_32 : f32 to vector<8x256xf32>
    %152 = arith.select %150, %146, %151 : vector<8x256xi1>, vector<8x256xf32>
    %cst_33 = arith.constant 0.000000e+00 : f32
    %153 = vector.shape_cast %148 : vector<1x256xi1> to vector<1x256xi1>
    %154 = vector.broadcast %153 : vector<1x256xi1> to vector<8x256xi1>
    %155 = vector.broadcast %cst_33 : f32 to vector<8x256xf32>
    %156 = arith.select %154, %147, %155 : vector<8x256xi1>, vector<8x256xf32>
    %157 = vector.extract_strided_slice %3 {offsets = [0, 3], sizes = [8, 1], strides = [1, 1]} : vector<8x9xf32> to vector<8x1xf32>
    %158 = vector.broadcast %157 : vector<8x1xf32> to vector<8x256xf32>
    %159 = arith.addf %152, %158 : vector<8x256xf32>
    %160 = arith.mulf %96, %159 : vector<8x256xf32>
    %161 = arith.maximumf %145, %160 : vector<8x256xf32>
    %162 = arith.andi %15, %30 : vector<1x256xi1>
    %cst_34 = arith.constant 0.000000e+00 : f32
    %163 = vector.shape_cast %162 : vector<1x256xi1> to vector<1x256xi1>
    %164 = vector.broadcast %163 : vector<1x256xi1> to vector<8x256xi1>
    %165 = vector.broadcast %cst_34 : f32 to vector<8x256xf32>
    %166 = arith.select %164, %97, %165 : vector<8x256xi1>, vector<8x256xf32>
    %cst_35 = arith.constant 0.000000e+00 : f32
    %167 = vector.shape_cast %162 : vector<1x256xi1> to vector<1x256xi1>
    %168 = vector.broadcast %167 : vector<1x256xi1> to vector<8x256xi1>
    %169 = vector.broadcast %cst_35 : f32 to vector<8x256xf32>
    %170 = arith.select %168, %98, %169 : vector<8x256xi1>, vector<8x256xf32>
    %171 = vector.extract_strided_slice %3 {offsets = [0, 4], sizes = [8, 1], strides = [1, 1]} : vector<8x9xf32> to vector<8x1xf32>
    %172 = vector.broadcast %171 : vector<8x1xf32> to vector<8x256xf32>
    %173 = arith.addf %166, %172 : vector<8x256xf32>
    %174 = arith.mulf %96, %173 : vector<8x256xf32>
    %175 = arith.maximumf %161, %174 : vector<8x256xf32>
    %c255_i32 = arith.constant 255 : i32
    %176 = tpu.dynamic_rotate %97 by %c255_i32 dim 1 : vector<8x256xf32>, i32 -> vector<8x256xf32>
    %c255_i32_36 = arith.constant 255 : i32
    %177 = tpu.dynamic_rotate %98 by %c255_i32_36 dim 1 : vector<8x256xf32>, i32 -> vector<8x256xf32>
    %178 = arith.andi %15, %35 : vector<1x256xi1>
    %cst_37 = arith.constant 0.000000e+00 : f32
    %179 = vector.shape_cast %178 : vector<1x256xi1> to vector<1x256xi1>
    %180 = vector.broadcast %179 : vector<1x256xi1> to vector<8x256xi1>
    %181 = vector.broadcast %cst_37 : f32 to vector<8x256xf32>
    %182 = arith.select %180, %176, %181 : vector<8x256xi1>, vector<8x256xf32>
    %cst_38 = arith.constant 0.000000e+00 : f32
    %183 = vector.shape_cast %178 : vector<1x256xi1> to vector<1x256xi1>
    %184 = vector.broadcast %183 : vector<1x256xi1> to vector<8x256xi1>
    %185 = vector.broadcast %cst_38 : f32 to vector<8x256xf32>
    %186 = arith.select %184, %177, %185 : vector<8x256xi1>, vector<8x256xf32>
    %187 = vector.extract_strided_slice %3 {offsets = [0, 5], sizes = [8, 1], strides = [1, 1]} : vector<8x9xf32> to vector<8x1xf32>
    %188 = vector.broadcast %187 : vector<8x1xf32> to vector<8x256xf32>
    %189 = arith.addf %182, %188 : vector<8x256xf32>
    %190 = arith.mulf %96, %189 : vector<8x256xf32>
    %191 = arith.maximumf %175, %190 : vector<8x256xf32>
    %c241_i32 = arith.constant 241 : i32
    %192 = tpu.dynamic_rotate %97 by %c241_i32 dim 1 : vector<8x256xf32>, i32 -> vector<8x256xf32>
    %c241_i32_39 = arith.constant 241 : i32
    %193 = tpu.dynamic_rotate %98 by %c241_i32_39 dim 1 : vector<8x256xf32>, i32 -> vector<8x256xf32>
    %194 = arith.andi %20, %25 : vector<1x256xi1>
    %cst_40 = arith.constant 0.000000e+00 : f32
    %195 = vector.shape_cast %194 : vector<1x256xi1> to vector<1x256xi1>
    %196 = vector.broadcast %195 : vector<1x256xi1> to vector<8x256xi1>
    %197 = vector.broadcast %cst_40 : f32 to vector<8x256xf32>
    %198 = arith.select %196, %192, %197 : vector<8x256xi1>, vector<8x256xf32>
    %cst_41 = arith.constant 0.000000e+00 : f32
    %199 = vector.shape_cast %194 : vector<1x256xi1> to vector<1x256xi1>
    %200 = vector.broadcast %199 : vector<1x256xi1> to vector<8x256xi1>
    %201 = vector.broadcast %cst_41 : f32 to vector<8x256xf32>
    %202 = arith.select %200, %193, %201 : vector<8x256xi1>, vector<8x256xf32>
    %203 = vector.extract_strided_slice %3 {offsets = [0, 6], sizes = [8, 1], strides = [1, 1]} : vector<8x9xf32> to vector<8x1xf32>
    %204 = vector.broadcast %203 : vector<8x1xf32> to vector<8x256xf32>
    %205 = arith.addf %198, %204 : vector<8x256xf32>
    %206 = arith.mulf %96, %205 : vector<8x256xf32>
    %207 = arith.maximumf %191, %206 : vector<8x256xf32>
    %c240_i32 = arith.constant 240 : i32
    %208 = tpu.dynamic_rotate %97 by %c240_i32 dim 1 : vector<8x256xf32>, i32 -> vector<8x256xf32>
    %c240_i32_42 = arith.constant 240 : i32
    %209 = tpu.dynamic_rotate %98 by %c240_i32_42 dim 1 : vector<8x256xf32>, i32 -> vector<8x256xf32>
    %210 = arith.andi %20, %30 : vector<1x256xi1>
    %cst_43 = arith.constant 0.000000e+00 : f32
    %211 = vector.shape_cast %210 : vector<1x256xi1> to vector<1x256xi1>
    %212 = vector.broadcast %211 : vector<1x256xi1> to vector<8x256xi1>
    %213 = vector.broadcast %cst_43 : f32 to vector<8x256xf32>
    %214 = arith.select %212, %208, %213 : vector<8x256xi1>, vector<8x256xf32>
    %cst_44 = arith.constant 0.000000e+00 : f32
    %215 = vector.shape_cast %210 : vector<1x256xi1> to vector<1x256xi1>
    %216 = vector.broadcast %215 : vector<1x256xi1> to vector<8x256xi1>
    %217 = vector.broadcast %cst_44 : f32 to vector<8x256xf32>
    %218 = arith.select %216, %209, %217 : vector<8x256xi1>, vector<8x256xf32>
    %219 = vector.extract_strided_slice %3 {offsets = [0, 7], sizes = [8, 1], strides = [1, 1]} : vector<8x9xf32> to vector<8x1xf32>
    %220 = vector.broadcast %219 : vector<8x1xf32> to vector<8x256xf32>
    %221 = arith.addf %214, %220 : vector<8x256xf32>
    %222 = arith.mulf %96, %221 : vector<8x256xf32>
    %223 = arith.maximumf %207, %222 : vector<8x256xf32>
    %c239_i32 = arith.constant 239 : i32
    %224 = tpu.dynamic_rotate %97 by %c239_i32 dim 1 : vector<8x256xf32>, i32 -> vector<8x256xf32>
    %c239_i32_45 = arith.constant 239 : i32
    %225 = tpu.dynamic_rotate %98 by %c239_i32_45 dim 1 : vector<8x256xf32>, i32 -> vector<8x256xf32>
    %226 = arith.andi %20, %35 : vector<1x256xi1>
    %cst_46 = arith.constant 0.000000e+00 : f32
    %227 = vector.shape_cast %226 : vector<1x256xi1> to vector<1x256xi1>
    %228 = vector.broadcast %227 : vector<1x256xi1> to vector<8x256xi1>
    %229 = vector.broadcast %cst_46 : f32 to vector<8x256xf32>
    %230 = arith.select %228, %224, %229 : vector<8x256xi1>, vector<8x256xf32>
    %cst_47 = arith.constant 0.000000e+00 : f32
    %231 = vector.shape_cast %226 : vector<1x256xi1> to vector<1x256xi1>
    %232 = vector.broadcast %231 : vector<1x256xi1> to vector<8x256xi1>
    %233 = vector.broadcast %cst_47 : f32 to vector<8x256xf32>
    %234 = arith.select %232, %225, %233 : vector<8x256xi1>, vector<8x256xf32>
    %235 = vector.extract_strided_slice %3 {offsets = [0, 8], sizes = [8, 1], strides = [1, 1]} : vector<8x9xf32> to vector<8x1xf32>
    %236 = vector.broadcast %235 : vector<8x1xf32> to vector<8x256xf32>
    %237 = arith.addf %230, %236 : vector<8x256xf32>
    %238 = arith.mulf %96, %237 : vector<8x256xf32>
    %239 = arith.maximumf %223, %238 : vector<8x256xf32>
    %240 = arith.subf %113, %239 : vector<8x256xf32>
    %241 = math.exp %240 : vector<8x256xf32>
    %242 = arith.mulf %241, %109 : vector<8x256xf32>
    %243 = arith.subf %128, %239 : vector<8x256xf32>
    %244 = math.exp %243 : vector<8x256xf32>
    %245 = arith.mulf %244, %124 : vector<8x256xf32>
    %246 = arith.addf %241, %244 : vector<8x256xf32>
    %247 = arith.addf %242, %245 : vector<8x256xf32>
    %248 = arith.subf %144, %239 : vector<8x256xf32>
    %249 = math.exp %248 : vector<8x256xf32>
    %250 = arith.mulf %249, %140 : vector<8x256xf32>
    %251 = arith.addf %246, %249 : vector<8x256xf32>
    %252 = arith.addf %247, %250 : vector<8x256xf32>
    %253 = arith.subf %160, %239 : vector<8x256xf32>
    %254 = math.exp %253 : vector<8x256xf32>
    %255 = arith.mulf %254, %156 : vector<8x256xf32>
    %256 = arith.addf %251, %254 : vector<8x256xf32>
    %257 = arith.addf %252, %255 : vector<8x256xf32>
    %258 = arith.subf %174, %239 : vector<8x256xf32>
    %259 = math.exp %258 : vector<8x256xf32>
    %260 = arith.mulf %259, %170 : vector<8x256xf32>
    %261 = arith.addf %256, %259 : vector<8x256xf32>
    %262 = arith.addf %257, %260 : vector<8x256xf32>
    %263 = arith.subf %190, %239 : vector<8x256xf32>
    %264 = math.exp %263 : vector<8x256xf32>
    %265 = arith.mulf %264, %186 : vector<8x256xf32>
    %266 = arith.addf %261, %264 : vector<8x256xf32>
    %267 = arith.addf %262, %265 : vector<8x256xf32>
    %268 = arith.subf %206, %239 : vector<8x256xf32>
    %269 = math.exp %268 : vector<8x256xf32>
    %270 = arith.mulf %269, %202 : vector<8x256xf32>
    %271 = arith.addf %266, %269 : vector<8x256xf32>
    %272 = arith.addf %267, %270 : vector<8x256xf32>
    %273 = arith.subf %222, %239 : vector<8x256xf32>
    %274 = math.exp %273 : vector<8x256xf32>
    %275 = arith.mulf %274, %218 : vector<8x256xf32>
    %276 = arith.addf %271, %274 : vector<8x256xf32>
    %277 = arith.addf %272, %275 : vector<8x256xf32>
    %278 = arith.subf %238, %239 : vector<8x256xf32>
    %279 = math.exp %278 : vector<8x256xf32>
    %280 = arith.mulf %279, %234 : vector<8x256xf32>
    %281 = arith.addf %276, %279 : vector<8x256xf32>
    %282 = arith.addf %277, %280 : vector<8x256xf32>
    %283 = tpu.reciprocal %281 {approx = true} : vector<8x256xf32> -> vector<8x256xf32>
    %284 = arith.mulf %281, %283 : vector<8x256xf32>
    %cst_48 = arith.constant 2.000000e+00 : f32
    %285 = vector.broadcast %cst_48 : f32 to vector<8x256xf32>
    %286 = arith.subf %285, %284 : vector<8x256xf32>
    %287 = arith.mulf %283, %286 : vector<8x256xf32>
    %288 = arith.mulf %282, %287 : vector<8x256xf32>
    %c0_49 = arith.constant 0 : index
    %c0_50 = arith.constant 0 : index
    %c0_51 = arith.constant 0 : index
    %289 = vector.load %arg8[%c0_49, %c0_50, %c0_51] : memref<2x8x256xf32, #tpu.memory_space<vmem>>, vector<1x8x256xf32>
    %290 = vector.shape_cast %289 : vector<1x8x256xf32> to vector<8x256xf32>
    %291 = vector.shape_cast %288 : vector<8x256xf32> to vector<1x8x256xf32>
    tpu.vector_store %arg8[%c0_49, %c0_50, %c0_51], %291 {strides = array<i32>} : memref<2x8x256xf32, #tpu.memory_space<vmem>>, vector<1x8x256xf32>,
    %c1_52 = arith.constant 1 : index
    %c0_53 = arith.constant 0 : index
    %c0_54 = arith.constant 0 : index
    %292 = vector.load %arg2[%c1_52, %c0_53, %c0_54] : memref<2x4x256xf32, #tpu.memory_space<vmem>>, vector<1x4x256xf32>
    %293 = vector.shape_cast %292 : vector<1x4x256xf32> to vector<4x256xf32>
    %294 = vector.extract_strided_slice %293 {offsets = [0, 0], sizes = [1, 256], strides = [1, 1]} : vector<4x256xf32> to vector<1x256xf32>
    %295 = vector.extract_strided_slice %0 {offsets = [0, 0], sizes = [8, 1], strides = [1, 1]} : vector<8x4xf32> to vector<8x1xf32>
    %296 = vector.broadcast %295 : vector<8x1xf32> to vector<8x256xf32>
    %297 = vector.broadcast %294 : vector<1x256xf32> to vector<8x256xf32>
    %298 = arith.mulf %296, %297 : vector<8x256xf32>
    %299 = vector.extract_strided_slice %1 {offsets = [0, 0], sizes = [8, 1], strides = [1, 1]} : vector<8x4xf32> to vector<8x1xf32>
    %300 = vector.broadcast %299 : vector<8x1xf32> to vector<8x256xf32>
    %301 = vector.broadcast %294 : vector<1x256xf32> to vector<8x256xf32>
    %302 = arith.mulf %300, %301 : vector<8x256xf32>
    %303 = vector.extract_strided_slice %2 {offsets = [0, 0], sizes = [8, 1], strides = [1, 1]} : vector<8x4xf32> to vector<8x1xf32>
    %304 = vector.broadcast %303 : vector<8x1xf32> to vector<8x256xf32>
    %305 = vector.broadcast %294 : vector<1x256xf32> to vector<8x256xf32>
    %306 = arith.mulf %304, %305 : vector<8x256xf32>
    %307 = vector.extract_strided_slice %293 {offsets = [1, 0], sizes = [1, 256], strides = [1, 1]} : vector<4x256xf32> to vector<1x256xf32>
    %308 = vector.extract_strided_slice %0 {offsets = [0, 1], sizes = [8, 1], strides = [1, 1]} : vector<8x4xf32> to vector<8x1xf32>
    %309 = vector.broadcast %308 : vector<8x1xf32> to vector<8x256xf32>
    %310 = vector.broadcast %307 : vector<1x256xf32> to vector<8x256xf32>
    %311 = arith.mulf %309, %310 : vector<8x256xf32>
    %312 = vector.extract_strided_slice %1 {offsets = [0, 1], sizes = [8, 1], strides = [1, 1]} : vector<8x4xf32> to vector<8x1xf32>
    %313 = vector.broadcast %312 : vector<8x1xf32> to vector<8x256xf32>
    %314 = vector.broadcast %307 : vector<1x256xf32> to vector<8x256xf32>
    %315 = arith.mulf %313, %314 : vector<8x256xf32>
    %316 = vector.extract_strided_slice %2 {offsets = [0, 1], sizes = [8, 1], strides = [1, 1]} : vector<8x4xf32> to vector<8x1xf32>
    %317 = vector.broadcast %316 : vector<8x1xf32> to vector<8x256xf32>
    %318 = vector.broadcast %307 : vector<1x256xf32> to vector<8x256xf32>
    %319 = arith.mulf %317, %318 : vector<8x256xf32>
    %320 = arith.addf %298, %311 : vector<8x256xf32>
    %321 = arith.addf %302, %315 : vector<8x256xf32>
    %322 = arith.addf %306, %319 : vector<8x256xf32>
    %323 = vector.extract_strided_slice %293 {offsets = [2, 0], sizes = [1, 256], strides = [1, 1]} : vector<4x256xf32> to vector<1x256xf32>
    %324 = vector.extract_strided_slice %0 {offsets = [0, 2], sizes = [8, 1], strides = [1, 1]} : vector<8x4xf32> to vector<8x1xf32>
    %325 = vector.broadcast %324 : vector<8x1xf32> to vector<8x256xf32>
    %326 = vector.broadcast %323 : vector<1x256xf32> to vector<8x256xf32>
    %327 = arith.mulf %325, %326 : vector<8x256xf32>
    %328 = vector.extract_strided_slice %1 {offsets = [0, 2], sizes = [8, 1], strides = [1, 1]} : vector<8x4xf32> to vector<8x1xf32>
    %329 = vector.broadcast %328 : vector<8x1xf32> to vector<8x256xf32>
    %330 = vector.broadcast %323 : vector<1x256xf32> to vector<8x256xf32>
    %331 = arith.mulf %329, %330 : vector<8x256xf32>
    %332 = vector.extract_strided_slice %2 {offsets = [0, 2], sizes = [8, 1], strides = [1, 1]} : vector<8x4xf32> to vector<8x1xf32>
    %333 = vector.broadcast %332 : vector<8x1xf32> to vector<8x256xf32>
    %334 = vector.broadcast %323 : vector<1x256xf32> to vector<8x256xf32>
    %335 = arith.mulf %333, %334 : vector<8x256xf32>
    %336 = arith.addf %320, %327 : vector<8x256xf32>
    %337 = arith.addf %321, %331 : vector<8x256xf32>
    %338 = arith.addf %322, %335 : vector<8x256xf32>
    %339 = vector.extract_strided_slice %293 {offsets = [3, 0], sizes = [1, 256], strides = [1, 1]} : vector<4x256xf32> to vector<1x256xf32>
    %340 = vector.extract_strided_slice %0 {offsets = [0, 3], sizes = [8, 1], strides = [1, 1]} : vector<8x4xf32> to vector<8x1xf32>
    %341 = vector.broadcast %340 : vector<8x1xf32> to vector<8x256xf32>
    %342 = vector.broadcast %339 : vector<1x256xf32> to vector<8x256xf32>
    %343 = arith.mulf %341, %342 : vector<8x256xf32>
    %344 = vector.extract_strided_slice %1 {offsets = [0, 3], sizes = [8, 1], strides = [1, 1]} : vector<8x4xf32> to vector<8x1xf32>
    %345 = vector.broadcast %344 : vector<8x1xf32> to vector<8x256xf32>
    %346 = vector.broadcast %339 : vector<1x256xf32> to vector<8x256xf32>
    %347 = arith.mulf %345, %346 : vector<8x256xf32>
    %348 = vector.extract_strided_slice %2 {offsets = [0, 3], sizes = [8, 1], strides = [1, 1]} : vector<8x4xf32> to vector<8x1xf32>
    %349 = vector.broadcast %348 : vector<8x1xf32> to vector<8x256xf32>
    %350 = vector.broadcast %339 : vector<1x256xf32> to vector<8x256xf32>
    %351 = arith.mulf %349, %350 : vector<8x256xf32>
    %352 = arith.addf %336, %343 : vector<8x256xf32>
    %353 = arith.addf %337, %347 : vector<8x256xf32>
    %354 = arith.addf %338, %351 : vector<8x256xf32>
    %c17_i32_55 = arith.constant 17 : i32
    %355 = tpu.dynamic_rotate %353 by %c17_i32_55 dim 1 : vector<8x256xf32>, i32 -> vector<8x256xf32>
    %c17_i32_56 = arith.constant 17 : i32
    %356 = tpu.dynamic_rotate %354 by %c17_i32_56 dim 1 : vector<8x256xf32>, i32 -> vector<8x256xf32>
    %357 = arith.andi %10, %25 : vector<1x256xi1>
    %cst_57 = arith.constant 0.000000e+00 : f32
    %358 = vector.shape_cast %357 : vector<1x256xi1> to vector<1x256xi1>
    %359 = vector.broadcast %358 : vector<1x256xi1> to vector<8x256xi1>
    %360 = vector.broadcast %cst_57 : f32 to vector<8x256xf32>
    %361 = arith.select %359, %355, %360 : vector<8x256xi1>, vector<8x256xf32>
    %cst_58 = arith.constant 0.000000e+00 : f32
    %362 = vector.shape_cast %357 : vector<1x256xi1> to vector<1x256xi1>
    %363 = vector.broadcast %362 : vector<1x256xi1> to vector<8x256xi1>
    %364 = vector.broadcast %cst_58 : f32 to vector<8x256xf32>
    %365 = arith.select %363, %356, %364 : vector<8x256xi1>, vector<8x256xf32>
    %366 = vector.extract_strided_slice %3 {offsets = [0, 0], sizes = [8, 1], strides = [1, 1]} : vector<8x9xf32> to vector<8x1xf32>
    %367 = vector.broadcast %366 : vector<8x1xf32> to vector<8x256xf32>
    %368 = arith.addf %361, %367 : vector<8x256xf32>
    %369 = arith.mulf %352, %368 : vector<8x256xf32>
    %c16_i32_59 = arith.constant 16 : i32
    %370 = tpu.dynamic_rotate %353 by %c16_i32_59 dim 1 : vector<8x256xf32>, i32 -> vector<8x256xf32>
    %c16_i32_60 = arith.constant 16 : i32
    %371 = tpu.dynamic_rotate %354 by %c16_i32_60 dim 1 : vector<8x256xf32>, i32 -> vector<8x256xf32>
    %372 = arith.andi %10, %30 : vector<1x256xi1>
    %cst_61 = arith.constant 0.000000e+00 : f32
    %373 = vector.shape_cast %372 : vector<1x256xi1> to vector<1x256xi1>
    %374 = vector.broadcast %373 : vector<1x256xi1> to vector<8x256xi1>
    %375 = vector.broadcast %cst_61 : f32 to vector<8x256xf32>
    %376 = arith.select %374, %370, %375 : vector<8x256xi1>, vector<8x256xf32>
    %cst_62 = arith.constant 0.000000e+00 : f32
    %377 = vector.shape_cast %372 : vector<1x256xi1> to vector<1x256xi1>
    %378 = vector.broadcast %377 : vector<1x256xi1> to vector<8x256xi1>
    %379 = vector.broadcast %cst_62 : f32 to vector<8x256xf32>
    %380 = arith.select %378, %371, %379 : vector<8x256xi1>, vector<8x256xf32>
    %381 = vector.extract_strided_slice %3 {offsets = [0, 1], sizes = [8, 1], strides = [1, 1]} : vector<8x9xf32> to vector<8x1xf32>
    %382 = vector.broadcast %381 : vector<8x1xf32> to vector<8x256xf32>
    %383 = arith.addf %376, %382 : vector<8x256xf32>
    %384 = arith.mulf %352, %383 : vector<8x256xf32>
    %385 = arith.maximumf %369, %384 : vector<8x256xf32>
    %c15_i32_63 = arith.constant 15 : i32
    %386 = tpu.dynamic_rotate %353 by %c15_i32_63 dim 1 : vector<8x256xf32>, i32 -> vector<8x256xf32>
    %c15_i32_64 = arith.constant 15 : i32
    %387 = tpu.dynamic_rotate %354 by %c15_i32_64 dim 1 : vector<8x256xf32>, i32 -> vector<8x256xf32>
    %388 = arith.andi %10, %35 : vector<1x256xi1>
    %cst_65 = arith.constant 0.000000e+00 : f32
    %389 = vector.shape_cast %388 : vector<1x256xi1> to vector<1x256xi1>
    %390 = vector.broadcast %389 : vector<1x256xi1> to vector<8x256xi1>
    %391 = vector.broadcast %cst_65 : f32 to vector<8x256xf32>
    %392 = arith.select %390, %386, %391 : vector<8x256xi1>, vector<8x256xf32>
    %cst_66 = arith.constant 0.000000e+00 : f32
    %393 = vector.shape_cast %388 : vector<1x256xi1> to vector<1x256xi1>
    %394 = vector.broadcast %393 : vector<1x256xi1> to vector<8x256xi1>
    %395 = vector.broadcast %cst_66 : f32 to vector<8x256xf32>
    %396 = arith.select %394, %387, %395 : vector<8x256xi1>, vector<8x256xf32>
    %397 = vector.extract_strided_slice %3 {offsets = [0, 2], sizes = [8, 1], strides = [1, 1]} : vector<8x9xf32> to vector<8x1xf32>
    %398 = vector.broadcast %397 : vector<8x1xf32> to vector<8x256xf32>
    %399 = arith.addf %392, %398 : vector<8x256xf32>
    %400 = arith.mulf %352, %399 : vector<8x256xf32>
    %401 = arith.maximumf %385, %400 : vector<8x256xf32>
    %c1_i32_67 = arith.constant 1 : i32
    %402 = tpu.dynamic_rotate %353 by %c1_i32_67 dim 1 : vector<8x256xf32>, i32 -> vector<8x256xf32>
    %c1_i32_68 = arith.constant 1 : i32
    %403 = tpu.dynamic_rotate %354 by %c1_i32_68 dim 1 : vector<8x256xf32>, i32 -> vector<8x256xf32>
    %404 = arith.andi %15, %25 : vector<1x256xi1>
    %cst_69 = arith.constant 0.000000e+00 : f32
    %405 = vector.shape_cast %404 : vector<1x256xi1> to vector<1x256xi1>
    %406 = vector.broadcast %405 : vector<1x256xi1> to vector<8x256xi1>
    %407 = vector.broadcast %cst_69 : f32 to vector<8x256xf32>
    %408 = arith.select %406, %402, %407 : vector<8x256xi1>, vector<8x256xf32>
    %cst_70 = arith.constant 0.000000e+00 : f32
    %409 = vector.shape_cast %404 : vector<1x256xi1> to vector<1x256xi1>
    %410 = vector.broadcast %409 : vector<1x256xi1> to vector<8x256xi1>
    %411 = vector.broadcast %cst_70 : f32 to vector<8x256xf32>
    %412 = arith.select %410, %403, %411 : vector<8x256xi1>, vector<8x256xf32>
    %413 = vector.extract_strided_slice %3 {offsets = [0, 3], sizes = [8, 1], strides = [1, 1]} : vector<8x9xf32> to vector<8x1xf32>
    %414 = vector.broadcast %413 : vector<8x1xf32> to vector<8x256xf32>
    %415 = arith.addf %408, %414 : vector<8x256xf32>
    %416 = arith.mulf %352, %415 : vector<8x256xf32>
    %417 = arith.maximumf %401, %416 : vector<8x256xf32>
    %418 = arith.andi %15, %30 : vector<1x256xi1>
    %cst_71 = arith.constant 0.000000e+00 : f32
    %419 = vector.shape_cast %418 : vector<1x256xi1> to vector<1x256xi1>
    %420 = vector.broadcast %419 : vector<1x256xi1> to vector<8x256xi1>
    %421 = vector.broadcast %cst_71 : f32 to vector<8x256xf32>
    %422 = arith.select %420, %353, %421 : vector<8x256xi1>, vector<8x256xf32>
    %cst_72 = arith.constant 0.000000e+00 : f32
    %423 = vector.shape_cast %418 : vector<1x256xi1> to vector<1x256xi1>
    %424 = vector.broadcast %423 : vector<1x256xi1> to vector<8x256xi1>
    %425 = vector.broadcast %cst_72 : f32 to vector<8x256xf32>
    %426 = arith.select %424, %354, %425 : vector<8x256xi1>, vector<8x256xf32>
    %427 = vector.extract_strided_slice %3 {offsets = [0, 4], sizes = [8, 1], strides = [1, 1]} : vector<8x9xf32> to vector<8x1xf32>
    %428 = vector.broadcast %427 : vector<8x1xf32> to vector<8x256xf32>
    %429 = arith.addf %422, %428 : vector<8x256xf32>
    %430 = arith.mulf %352, %429 : vector<8x256xf32>
    %431 = arith.maximumf %417, %430 : vector<8x256xf32>
    %c255_i32_73 = arith.constant 255 : i32
    %432 = tpu.dynamic_rotate %353 by %c255_i32_73 dim 1 : vector<8x256xf32>, i32 -> vector<8x256xf32>
    %c255_i32_74 = arith.constant 255 : i32
    %433 = tpu.dynamic_rotate %354 by %c255_i32_74 dim 1 : vector<8x256xf32>, i32 -> vector<8x256xf32>
    %434 = arith.andi %15, %35 : vector<1x256xi1>
    %cst_75 = arith.constant 0.000000e+00 : f32
    %435 = vector.shape_cast %434 : vector<1x256xi1> to vector<1x256xi1>
    %436 = vector.broadcast %435 : vector<1x256xi1> to vector<8x256xi1>
    %437 = vector.broadcast %cst_75 : f32 to vector<8x256xf32>
    %438 = arith.select %436, %432, %437 : vector<8x256xi1>, vector<8x256xf32>
    %cst_76 = arith.constant 0.000000e+00 : f32
    %439 = vector.shape_cast %434 : vector<1x256xi1> to vector<1x256xi1>
    %440 = vector.broadcast %439 : vector<1x256xi1> to vector<8x256xi1>
    %441 = vector.broadcast %cst_76 : f32 to vector<8x256xf32>
    %442 = arith.select %440, %433, %441 : vector<8x256xi1>, vector<8x256xf32>
    %443 = vector.extract_strided_slice %3 {offsets = [0, 5], sizes = [8, 1], strides = [1, 1]} : vector<8x9xf32> to vector<8x1xf32>
    %444 = vector.broadcast %443 : vector<8x1xf32> to vector<8x256xf32>
    %445 = arith.addf %438, %444 : vector<8x256xf32>
    %446 = arith.mulf %352, %445 : vector<8x256xf32>
    %447 = arith.maximumf %431, %446 : vector<8x256xf32>
    %c241_i32_77 = arith.constant 241 : i32
    %448 = tpu.dynamic_rotate %353 by %c241_i32_77 dim 1 : vector<8x256xf32>, i32 -> vector<8x256xf32>
    %c241_i32_78 = arith.constant 241 : i32
    %449 = tpu.dynamic_rotate %354 by %c241_i32_78 dim 1 : vector<8x256xf32>, i32 -> vector<8x256xf32>
    %450 = arith.andi %20, %25 : vector<1x256xi1>
    %cst_79 = arith.constant 0.000000e+00 : f32
    %451 = vector.shape_cast %450 : vector<1x256xi1> to vector<1x256xi1>
    %452 = vector.broadcast %451 : vector<1x256xi1> to vector<8x256xi1>
    %453 = vector.broadcast %cst_79 : f32 to vector<8x256xf32>
    %454 = arith.select %452, %448, %453 : vector<8x256xi1>, vector<8x256xf32>
    %cst_80 = arith.constant 0.000000e+00 : f32
    %455 = vector.shape_cast %450 : vector<1x256xi1> to vector<1x256xi1>
    %456 = vector.broadcast %455 : vector<1x256xi1> to vector<8x256xi1>
    %457 = vector.broadcast %cst_80 : f32 to vector<8x256xf32>
    %458 = arith.select %456, %449, %457 : vector<8x256xi1>, vector<8x256xf32>
    %459 = vector.extract_strided_slice %3 {offsets = [0, 6], sizes = [8, 1], strides = [1, 1]} : vector<8x9xf32> to vector<8x1xf32>
    %460 = vector.broadcast %459 : vector<8x1xf32> to vector<8x256xf32>
    %461 = arith.addf %454, %460 : vector<8x256xf32>
    %462 = arith.mulf %352, %461 : vector<8x256xf32>
    %463 = arith.maximumf %447, %462 : vector<8x256xf32>
    %c240_i32_81 = arith.constant 240 : i32
    %464 = tpu.dynamic_rotate %353 by %c240_i32_81 dim 1 : vector<8x256xf32>, i32 -> vector<8x256xf32>
    %c240_i32_82 = arith.constant 240 : i32
    %465 = tpu.dynamic_rotate %354 by %c240_i32_82 dim 1 : vector<8x256xf32>, i32 -> vector<8x256xf32>
    %466 = arith.andi %20, %30 : vector<1x256xi1>
    %cst_83 = arith.constant 0.000000e+00 : f32
    %467 = vector.shape_cast %466 : vector<1x256xi1> to vector<1x256xi1>
    %468 = vector.broadcast %467 : vector<1x256xi1> to vector<8x256xi1>
    %469 = vector.broadcast %cst_83 : f32 to vector<8x256xf32>
    %470 = arith.select %468, %464, %469 : vector<8x256xi1>, vector<8x256xf32>
    %cst_84 = arith.constant 0.000000e+00 : f32
    %471 = vector.shape_cast %466 : vector<1x256xi1> to vector<1x256xi1>
    %472 = vector.broadcast %471 : vector<1x256xi1> to vector<8x256xi1>
    %473 = vector.broadcast %cst_84 : f32 to vector<8x256xf32>
    %474 = arith.select %472, %465, %473 : vector<8x256xi1>, vector<8x256xf32>
    %475 = vector.extract_strided_slice %3 {offsets = [0, 7], sizes = [8, 1], strides = [1, 1]} : vector<8x9xf32> to vector<8x1xf32>
    %476 = vector.broadcast %475 : vector<8x1xf32> to vector<8x256xf32>
    %477 = arith.addf %470, %476 : vector<8x256xf32>
    %478 = arith.mulf %352, %477 : vector<8x256xf32>
    %479 = arith.maximumf %463, %478 : vector<8x256xf32>
    %c239_i32_85 = arith.constant 239 : i32
    %480 = tpu.dynamic_rotate %353 by %c239_i32_85 dim 1 : vector<8x256xf32>, i32 -> vector<8x256xf32>
    %c239_i32_86 = arith.constant 239 : i32
    %481 = tpu.dynamic_rotate %354 by %c239_i32_86 dim 1 : vector<8x256xf32>, i32 -> vector<8x256xf32>
    %482 = arith.andi %20, %35 : vector<1x256xi1>
    %cst_87 = arith.constant 0.000000e+00 : f32
    %483 = vector.shape_cast %482 : vector<1x256xi1> to vector<1x256xi1>
    %484 = vector.broadcast %483 : vector<1x256xi1> to vector<8x256xi1>
    %485 = vector.broadcast %cst_87 : f32 to vector<8x256xf32>
    %486 = arith.select %484, %480, %485 : vector<8x256xi1>, vector<8x256xf32>
    %cst_88 = arith.constant 0.000000e+00 : f32
    %487 = vector.shape_cast %482 : vector<1x256xi1> to vector<1x256xi1>
    %488 = vector.broadcast %487 : vector<1x256xi1> to vector<8x256xi1>
    %489 = vector.broadcast %cst_88 : f32 to vector<8x256xf32>
    %490 = arith.select %488, %481, %489 : vector<8x256xi1>, vector<8x256xf32>
    %491 = vector.extract_strided_slice %3 {offsets = [0, 8], sizes = [8, 1], strides = [1, 1]} : vector<8x9xf32> to vector<8x1xf32>
    %492 = vector.broadcast %491 : vector<8x1xf32> to vector<8x256xf32>
    %493 = arith.addf %486, %492 : vector<8x256xf32>
    %494 = arith.mulf %352, %493 : vector<8x256xf32>
    %495 = arith.maximumf %479, %494 : vector<8x256xf32>
    %496 = arith.subf %369, %495 : vector<8x256xf32>
    %497 = math.exp %496 : vector<8x256xf32>
    %498 = arith.mulf %497, %365 : vector<8x256xf32>
    %499 = arith.subf %384, %495 : vector<8x256xf32>
    %500 = math.exp %499 : vector<8x256xf32>
    %501 = arith.mulf %500, %380 : vector<8x256xf32>
    %502 = arith.addf %497, %500 : vector<8x256xf32>
    %503 = arith.addf %498, %501 : vector<8x256xf32>
    %504 = arith.subf %400, %495 : vector<8x256xf32>
    %505 = math.exp %504 : vector<8x256xf32>
    %506 = arith.mulf %505, %396 : vector<8x256xf32>
    %507 = arith.addf %502, %505 : vector<8x256xf32>
    %508 = arith.addf %503, %506 : vector<8x256xf32>
    %509 = arith.subf %416, %495 : vector<8x256xf32>
    %510 = math.exp %509 : vector<8x256xf32>
    %511 = arith.mulf %510, %412 : vector<8x256xf32>
    %512 = arith.addf %507, %510 : vector<8x256xf32>
    %513 = arith.addf %508, %511 : vector<8x256xf32>
    %514 = arith.subf %430, %495 : vector<8x256xf32>
    %515 = math.exp %514 : vector<8x256xf32>
    %516 = arith.mulf %515, %426 : vector<8x256xf32>
    %517 = arith.addf %512, %515 : vector<8x256xf32>
    %518 = arith.addf %513, %516 : vector<8x256xf32>
    %519 = arith.subf %446, %495 : vector<8x256xf32>
    %520 = math.exp %519 : vector<8x256xf32>
    %521 = arith.mulf %520, %442 : vector<8x256xf32>
    %522 = arith.addf %517, %520 : vector<8x256xf32>
    %523 = arith.addf %518, %521 : vector<8x256xf32>
    %524 = arith.subf %462, %495 : vector<8x256xf32>
    %525 = math.exp %524 : vector<8x256xf32>
    %526 = arith.mulf %525, %458 : vector<8x256xf32>
    %527 = arith.addf %522, %525 : vector<8x256xf32>
    %528 = arith.addf %523, %526 : vector<8x256xf32>
    %529 = arith.subf %478, %495 : vector<8x256xf32>
    %530 = math.exp %529 : vector<8x256xf32>
    %531 = arith.mulf %530, %474 : vector<8x256xf32>
    %532 = arith.addf %527, %530 : vector<8x256xf32>
    %533 = arith.addf %528, %531 : vector<8x256xf32>
    %534 = arith.subf %494, %495 : vector<8x256xf32>
    %535 = math.exp %534 : vector<8x256xf32>
    %536 = arith.mulf %535, %490 : vector<8x256xf32>
    %537 = arith.addf %532, %535 : vector<8x256xf32>
    %538 = arith.addf %533, %536 : vector<8x256xf32>
    %539 = tpu.reciprocal %537 {approx = true} : vector<8x256xf32> -> vector<8x256xf32>
    %540 = arith.mulf %537, %539 : vector<8x256xf32>
    %cst_89 = arith.constant 2.000000e+00 : f32
    %541 = vector.broadcast %cst_89 : f32 to vector<8x256xf32>
    %542 = arith.subf %541, %540 : vector<8x256xf32>
    %543 = arith.mulf %539, %542 : vector<8x256xf32>
    %544 = arith.mulf %538, %543 : vector<8x256xf32>
    %c1_90 = arith.constant 1 : index
    %c0_91 = arith.constant 0 : index
    %c0_92 = arith.constant 0 : index
    %545 = vector.load %arg8[%c1_90, %c0_91, %c0_92] : memref<2x8x256xf32, #tpu.memory_space<vmem>>, vector<1x8x256xf32>
    %546 = vector.shape_cast %545 : vector<1x8x256xf32> to vector<8x256xf32>
    %547 = vector.shape_cast %544 : vector<8x256xf32> to vector<1x8x256xf32>
    tpu.vector_store %arg8[%c1_90, %c0_91, %c0_92], %547 {strides = array<i32>} : memref<2x8x256xf32, #tpu.memory_space<vmem>>, vector<1x8x256xf32>,
    return
  }
  func.func @transform_0(%arg0: i32, %arg1: i32) -> (i32, i32, i32) {
    %c0_i32 = arith.constant 0 : i32
    %c0_i32_0 = arith.constant 0 : i32
    %c0_i32_1 = arith.constant 0 : i32
    return %arg0, %c0_i32, %c0_i32_0 : i32, i32, i32
  }
  func.func @transform_1(%arg0: i32, %arg1: i32) -> (i32, i32) {
    %c0_i32 = arith.constant 0 : i32
    %c0_i32_0 = arith.constant 0 : i32
    return %arg1, %c0_i32 : i32, i32
  }
  func.func @transform_2(%arg0: i32, %arg1: i32) -> (i32, i32) {
    %c0_i32 = arith.constant 0 : i32
    %c0_i32_0 = arith.constant 0 : i32
    return %arg1, %c0_i32 : i32, i32
  }
  func.func @transform_3(%arg0: i32, %arg1: i32) -> (i32, i32) {
    %c0_i32 = arith.constant 0 : i32
    %c0_i32_0 = arith.constant 0 : i32
    return %arg1, %c0_i32 : i32, i32
  }
  func.func @transform_4(%arg0: i32, %arg1: i32) -> (i32, i32) {
    %c0_i32 = arith.constant 0 : i32
    %c0_i32_0 = arith.constant 0 : i32
    return %arg1, %c0_i32 : i32, i32
  }
  func.func @transform_5(%arg0: i32, %arg1: i32) -> (i32, i32) {
    %c0_i32 = arith.constant 0 : i32
    %c0_i32_0 = arith.constant 0 : i32
    %c0_i32_1 = arith.constant 0 : i32
    return %c0_i32, %c0_i32_0 : i32, i32
  }
  func.func @transform_6(%arg0: i32, %arg1: i32) -> (i32, i32, i32) {
    %c0_i32 = arith.constant 0 : i32
    %c0_i32_0 = arith.constant 0 : i32
    return %arg0, %arg1, %c0_i32 : i32, i32, i32
  }
}

</mosaic_0001>

<llo_original>
// kernel: tpu_custom_call.1
$region0: #{tpu_custom_call.1}
  #allocation0 [shape = 'u32[]', space=smem, size = 0x4, offset = 0x4, fixed_abs, tag = 'smem constant byte address 0x4 - core index']
  #allocation1 [shape = 'u32[144,128]{1,0:T(1,128)}', space=vmem, size = 0x12000, scoped, tag = 'internal scratch']
  %s0 = inlined_call_operand.vmem [shape: f32[2,4,256], index: 0, kind: input, shape index: {}]
  %s1 = inlined_call_operand.vmem [shape: f32[8,4], index: 1, kind: input, shape index: {}]
  %s2 = inlined_call_operand.vmem [shape: f32[8,4], index: 2, kind: input, shape index: {}]
  %s3 = inlined_call_operand.vmem [shape: f32[8,4], index: 3, kind: input, shape index: {}]
  %s4 = inlined_call_operand.vmem [shape: f32[8,9], index: 4, kind: input, shape index: {}]
  %s5 = inlined_call_operand.vmem [shape: s32[2,256], index: 5, kind: input, shape index: {}]
  %s6 = inlined_call_operand.hbm [shape: f32[2,8,256], index: 6, kind: output, shape index: {}]
  %s7 = sld [smem:[#allocation0]]
  $region34: #{tpu_custom_call.1} parent=0
    _
  %s9 = ssub.s32 1, %s7
  %s10 = scalar_select 0, %s9, %s7
  $region1: #{tpu_custom_call.1} parent=0
    #allocation2 [shape = 'u8[16384]{0}', space=vmem, size = 0x4000, scoped, tag = 'output window, operand 0, single buffered']
    #allocation3 [shape = 's32[1]{0}', space=sflag, size = 0x4, scoped, tag = 'scoped memory for tpu_custom_call.1']
    %11 = vsyncpa [#allocation3], 0
    // Predicated region
    $region2: #{tpu_custom_call.1} parent=1 // pred_check
      _
    $region3: #{tpu_custom_call.1} parent=1 // pred_check_branch
      %13 = sbr.rel (0) target = $region5
    $region4: #{tpu_custom_call.1} parent=1 // pred_region
      _
    $region5: #{tpu_custom_call.1} parent=1 // pred_fallthru
      _
    // Predicated region
    $region6: #{tpu_custom_call.1} parent=1 // pred_check
      _
    $region7: #{tpu_custom_call.1} parent=1 // pred_check_branch
      %15 = sbr.rel (0) target = $region9
    $region8: #{tpu_custom_call.1} parent=1 // pred_region
      _
    $region9: #{tpu_custom_call.1} parent=1 // pred_fallthru
      _
    // Predicated region
    $region10: #{tpu_custom_call.1} parent=1 // pred_check
      _
    $region11: #{tpu_custom_call.1} parent=1 // pred_check_branch
      %17 = sbr.rel (0) target = $region13
    $region12: #{tpu_custom_call.1} parent=1 // pred_region
      _
    $region13: #{tpu_custom_call.1} parent=1 // pred_fallthru
      _
    // Predicated region
    $region14: #{tpu_custom_call.1} parent=1 // pred_check
      _
    $region15: #{tpu_custom_call.1} parent=1 // pred_check_branch
      %19 = sbr.rel (0) target = $region17
    $region16: #{tpu_custom_call.1} parent=1 // pred_region
      _
    $region17: #{tpu_custom_call.1} parent=1 // pred_fallthru
      _
    // Predicated region
    $region18: #{tpu_custom_call.1} parent=1 // pred_check
      _
    $region19: #{tpu_custom_call.1} parent=1 // pred_check_branch
      %21 = sbr.rel (0) target = $region21
    $region20: #{tpu_custom_call.1} parent=1 // pred_region
      _
    $region21: #{tpu_custom_call.1} parent=1 // pred_fallthru
      _
    // Predicated region
    $region22: #{tpu_custom_call.1} parent=1 // pred_check
      _
    $region23: #{tpu_custom_call.1} parent=1 // pred_check_branch
      %23 = sbr.rel (0) target = $region25
    $region24: #{tpu_custom_call.1} parent=1 // pred_region
      _
    $region25: #{tpu_custom_call.1} parent=1 // pred_fallthru
      _
    %v24 = vld [vmem:[%s1] sm:$0xff]
    %v25 = vld [vmem:[%s2] sm:$0xff]
    %v26 = vld [vmem:[%s3] sm:$0xff]
    %v27 = vld [vmem:[%s4] sm:$0xff]
    %v28 = vld [vmem:[%s5] ss:$2 sm:$0x3]
    %s29 = scalar_lea.vmem %s5, 1
    %v30 = vld [vmem:[%s29] ss:$2 sm:$0x3]
    %vm31 = vcmp.ge.s32.totalorder %v28, 1
    %vm32 = vcmp.lt.s32.totalorder %v28, 17
    %vm33 = vmand %vm31, %vm32
    %vm34 = vcmp.ge.s32.totalorder %v28, 0
    %vm35 = vcmp.lt.s32.totalorder %v28, 16
    %vm36 = vmand %vm34, %vm35
    %vm37 = vcmp.ge.s32.totalorder %v28, 4294967295
    %vm38 = vcmp.lt.s32.totalorder %v28, 15
    %vm39 = vmand %vm37, %vm38
    %vm40 = vcmp.ge.s32.totalorder %v30, 1
    %vm41 = vcmp.lt.s32.totalorder %v30, 17
    %vm42 = vmand %vm40, %vm41
    %vm43 = vcmp.ge.s32.totalorder %v30, 0
    %vm44 = vcmp.lt.s32.totalorder %v30, 16
    %vm45 = vmand %vm43, %vm44
    %vm46 = vcmp.ge.s32.totalorder %v30, 4294967295
    %vm47 = vcmp.lt.s32.totalorder %v30, 15
    %vm48 = vmand %vm46, %vm47
    %v49 = vld [vmem:[%s0] sm:$0xff]
    %51 = vset.pattern.permute.xlu0 0
    %52 = vperm.xlu0 %51, %v24
    %v53 = vpop.permute.xlu0 %52
    %v56 = vlaneseq
    %v57 = vshrl.u32 %v56, 7
    %v58 = vsub.s32 0, %v57
    %v59 = vrot.slane %v49, %v58
    %v60 = vlaneseq
    %v61 = vshrl.u32 %v60, 7
    %v62 = vsub.s32 4, %v61
    %v63 = vrot.slane %v49, %v62
    %v66 = vlaneseq
    %v67 = vshrl.u32 %v66, 7
    %v68 = vsub.s32 0, %v67
    %v69 = vrot.slane %v59, %v68
    %v70 = vlaneseq
    %v71 = vshrl.u32 %v70, 7
    %v72 = vsub.s32 0, %v71
    %v73 = vrot.slane %v63, %v72
    %v74 = vmul.f32 %v53, %v69
    %v75 = vmul.f32 %v53, %v73
    %77 = vset.pattern.permute.xlu0 0
    %78 = vperm.xlu0 %77, %v25
    %v79 = vpop.permute.xlu0 %78
    %v81 = vmul.f32 %v79, %v69
    %v82 = vmul.f32 %v79, %v73
    %84 = vset.pattern.permute.xlu0 0
    %85 = vperm.xlu0 %84, %v26
    %v86 = vpop.permute.xlu0 %85
    %v88 = vmul.f32 %v86, %v69
    %v89 = vmul.f32 %v86, %v73
    %90 = vset.pattern.permute.xlu0 1
    %91 = vperm.xlu0 %90, %v24
    %v92 = vpop.permute.xlu0 %91
    %v94 = vlaneseq
    %v95 = vshrl.u32 %v94, 7
    %v96 = vsub.s32 1, %v95
    %v97 = vrot.slane %v49, %v96
    %v98 = vlaneseq
    %v99 = vshrl.u32 %v98, 7
    %v100 = vsub.s32 5, %v99
    %v101 = vrot.slane %v49, %v100
    %v104 = vlaneseq
    %v105 = vshrl.u32 %v104, 7
    %v106 = vsub.s32 1, %v105
    %v107 = vrot.slane %v97, %v106
    %v108 = vlaneseq
    %v109 = vshrl.u32 %v108, 7
    %v110 = vsub.s32 1, %v109
    %v111 = vrot.slane %v101, %v110
    %v112 = vmul.f32 %v92, %v107
    %v113 = vmul.f32 %v92, %v111
    %114 = vset.pattern.permute.xlu0 1
    %115 = vperm.xlu0 %114, %v25
    %v116 = vpop.permute.xlu0 %115
    %v118 = vmul.f32 %v116, %v107
    %v119 = vmul.f32 %v116, %v111
    %120 = vset.pattern.permute.xlu0 1
    %121 = vperm.xlu0 %120, %v26
    %v122 = vpop.permute.xlu0 %121
    %v124 = vmul.f32 %v122, %v107
    %v125 = vmul.f32 %v122, %v111
    %v126 = vadd.f32 %v74, %v112
    %v127 = vadd.f32 %v75, %v113
    %v128 = vadd.f32 %v81, %v118
    %v129 = vadd.f32 %v82, %v119
    %v130 = vadd.f32 %v88, %v124
    %v131 = vadd.f32 %v89, %v125
    %132 = vset.pattern.permute.xlu0 2
    %133 = vperm.xlu0 %132, %v24
    %v134 = vpop.permute.xlu0 %133
    %v136 = vlaneseq
    %v137 = vshrl.u32 %v136, 7
    %v138 = vsub.s32 2, %v137
    %v139 = vrot.slane %v49, %v138
    %v140 = vlaneseq
    %v141 = vshrl.u32 %v140, 7
    %v142 = vsub.s32 6, %v141
    %v143 = vrot.slane %v49, %v142
    %v146 = vlaneseq
    %v147 = vshrl.u32 %v146, 7
    %v148 = vsub.s32 2, %v147
    %v149 = vrot.slane %v139, %v148
    %v150 = vlaneseq
    %v151 = vshrl.u32 %v150, 7
    %v152 = vsub.s32 2, %v151
    %v153 = vrot.slane %v143, %v152
    %v154 = vmul.f32 %v134, %v149
    %v155 = vmul.f32 %v134, %v153
    %156 = vset.pattern.permute.xlu0 2
    %157 = vperm.xlu0 %156, %v25
    %v158 = vpop.permute.xlu0 %157
    %v160 = vmul.f32 %v158, %v149
    %v161 = vmul.f32 %v158, %v153
    %162 = vset.pattern.permute.xlu0 2
    %163 = vperm.xlu0 %162, %v26
    %v164 = vpop.permute.xlu0 %163
    %v166 = vmul.f32 %v164, %v149
    %v167 = vmul.f32 %v164, %v153
    %v168 = vadd.f32 %v126, %v154
    %v169 = vadd.f32 %v127, %v155
    %v170 = vadd.f32 %v128, %v160
    %v171 = vadd.f32 %v129, %v161
    %v172 = vadd.f32 %v130, %v166
    %v173 = vadd.f32 %v131, %v167
    %174 = vset.pattern.permute.xlu0 3
    %175 = vperm.xlu0 %174, %v24
    %v176 = vpop.permute.xlu0 %175
    %v178 = vlaneseq
    %v179 = vshrl.u32 %v178, 7
    %v180 = vsub.s32 3, %v179
    %v181 = vrot.slane %v49, %v180
    %v182 = vlaneseq
    %v183 = vshrl.u32 %v182, 7
    %v184 = vsub.s32 7, %v183
    %v185 = vrot.slane %v49, %v184
    %v188 = vlaneseq
    %v189 = vshrl.u32 %v188, 7
    %v190 = vsub.s32 3, %v189
    %v191 = vrot.slane %v181, %v190
    %v192 = vlaneseq
    %v193 = vshrl.u32 %v192, 7
    %v194 = vsub.s32 3, %v193
    %v195 = vrot.slane %v185, %v194
    %v196 = vmul.f32 %v176, %v191
    %v197 = vmul.f32 %v176, %v195
    %198 = vset.pattern.permute.xlu0 3
    %199 = vperm.xlu0 %198, %v25
    %v200 = vpop.permute.xlu0 %199
    %v202 = vmul.f32 %v200, %v191
    %v203 = vmul.f32 %v200, %v195
    %204 = vset.pattern.permute.xlu0 3
    %205 = vperm.xlu0 %204, %v26
    %v206 = vpop.permute.xlu0 %205
    %v208 = vmul.f32 %v206, %v191
    %v209 = vmul.f32 %v206, %v195
    %v210 = vadd.f32 %v168, %v196
    %v211 = vadd.f32 %v169, %v197
    %v212 = vadd.f32 %v170, %v202
    %v213 = vadd.f32 %v171, %v203
    %v214 = vadd.f32 %v172, %v208
    %v215 = vadd.f32 %v173, %v209
    %216 = vrot.lane.b32.xlu0 %v212, 17
    %v217 = vpop.permute.xlu0 %216
    %218 = vrot.lane.b32.xlu0 %v213, 17
    %v219 = vpop.permute.xlu0 %218
    %v220 = vlaneseq
    %v221 = vand.u32 %v220, 127
    %vm222 = vcmp.lt.s32.totalorder %v221, 17
    %v223 = vsel %vm222, %v217, %v219
    %v224 = vsel %vm222, %v219, %v217
    %225 = vrot.lane.b32.xlu0 %v214, 17
    %v226 = vpop.permute.xlu0 %225
    %227 = vrot.lane.b32.xlu0 %v215, 17
    %v228 = vpop.permute.xlu0 %227
    %v229 = vsel %vm222, %v226, %v228
    %v230 = vsel %vm222, %v228, %v226
    %vm231 = vmand %vm33, %vm42
    %v232 = vsel %vm231, 1, 0
    %v233 = vlaneseq
    %v234 = vshrl.u32 %v233, 7
    %v235 = vsub.s32 0, %v234
    %v236 = vrot.slane %v232, %v235
    %v237 = vlaneseq
    %v238 = vshrl.u32 %v237, 7
    %v239 = vsub.s32 1, %v238
    %v240 = vrot.slane %v232, %v239
    %vm241 = vcmp.eq.s32.totalorder %v236, 1
    %vm242 = vcmp.eq.s32.totalorder %v240, 1
    %v243 = vsel %vm241, %v224, 0.0
    %v244 = vsel %vm242, %v223, 0.0
    %v245 = vsel %vm241, %v230, 0.0
    %v246 = vsel %vm242, %v229, 0.0
    %248 = vset.pattern.permute.xlu0 0
    %249 = vperm.xlu0 %248, %v27
    %v250 = vpop.permute.xlu0 %249
    %v252 = vadd.f32 %v243, %v250
    %v253 = vadd.f32 %v244, %v250
    %v254 = vmul.f32 %v210, %v252
    %v255 = vmul.f32 %v211, %v253
    %256 = vrot.lane.b32.xlu0 %v212, 16
    %v257 = vpop.permute.xlu0 %256
    %258 = vrot.lane.b32.xlu0 %v213, 16
    %v259 = vpop.permute.xlu0 %258
    %vm260 = vcmp.lt.s32.totalorder %v221, 16
    %v261 = vsel %vm260, %v257, %v259
    %v262 = vsel %vm260, %v259, %v257
    %263 = vrot.lane.b32.xlu0 %v214, 16
    %v264 = vpop.permute.xlu0 %263
    %265 = vrot.lane.b32.xlu0 %v215, 16
    %v266 = vpop.permute.xlu0 %265
    %v267 = vsel %vm260, %v264, %v266
    %v268 = vsel %vm260, %v266, %v264
    %vm269 = vmand %vm33, %vm45
    %v270 = vsel %vm269, 1, 0
    %v271 = vlaneseq
    %v272 = vshrl.u32 %v271, 7
    %v273 = vsub.s32 0, %v272
    %v274 = vrot.slane %v270, %v273
    %v275 = vlaneseq
    %v276 = vshrl.u32 %v275, 7
    %v277 = vsub.s32 1, %v276
    %v278 = vrot.slane %v270, %v277
    %vm279 = vcmp.eq.s32.totalorder %v274, 1
    %vm280 = vcmp.eq.s32.totalorder %v278, 1
    %v281 = vsel %vm279, %v262, 0.0
    %v282 = vsel %vm280, %v261, 0.0
    %v283 = vsel %vm279, %v268, 0.0
    %v284 = vsel %vm280, %v267, 0.0
    %285 = vset.pattern.permute.xlu0 1
    %286 = vperm.xlu0 %285, %v27
    %v287 = vpop.permute.xlu0 %286
    %v289 = vadd.f32 %v281, %v287
    %v290 = vadd.f32 %v282, %v287
    %v291 = vmul.f32 %v210, %v289
    %v292 = vmul.f32 %v211, %v290
    %v293 = vmax.f32 %v254, %v291
    %v294 = vmax.f32 %v255, %v292
    %295 = vrot.lane.b32.xlu0 %v212, 15
    %v296 = vpop.permute.xlu0 %295
    %297 = vrot.lane.b32.xlu0 %v213, 15
    %v298 = vpop.permute.xlu0 %297
    %vm299 = vcmp.lt.s32.totalorder %v221, 15
    %v300 = vsel %vm299, %v296, %v298
    %v301 = vsel %vm299, %v298, %v296
    %302 = vrot.lane.b32.xlu0 %v214, 15
    %v303 = vpop.permute.xlu0 %302
    %304 = vrot.lane.b32.xlu0 %v215, 15
    %v305 = vpop.permute.xlu0 %304
    %v306 = vsel %vm299, %v303, %v305
    %v307 = vsel %vm299, %v305, %v303
    %vm308 = vmand %vm33, %vm48
    %v309 = vsel %vm308, 1, 0
    %v310 = vlaneseq
    %v311 = vshrl.u32 %v310, 7
    %v312 = vsub.s32 0, %v311
    %v313 = vrot.slane %v309, %v312
    %v314 = vlaneseq
    %v315 = vshrl.u32 %v314, 7
    %v316 = vsub.s32 1, %v315
    %v317 = vrot.slane %v309, %v316
    %vm318 = vcmp.eq.s32.totalorder %v313, 1
    %vm319 = vcmp.eq.s32.totalorder %v317, 1
    %v320 = vsel %vm318, %v301, 0.0
    %v321 = vsel %vm319, %v300, 0.0
    %v322 = vsel %vm318, %v307, 0.0
    %v323 = vsel %vm319, %v306, 0.0
    %324 = vset.pattern.permute.xlu0 2
    %325 = vperm.xlu0 %324, %v27
    %v326 = vpop.permute.xlu0 %325
    %v328 = vadd.f32 %v320, %v326
    %v329 = vadd.f32 %v321, %v326
    %v330 = vmul.f32 %v210, %v328
    %v331 = vmul.f32 %v211, %v329
    %v332 = vmax.f32 %v293, %v330
    %v333 = vmax.f32 %v294, %v331
    %334 = vrot.lane.b32.xlu0 %v212, 1
    %v335 = vpop.permute.xlu0 %334
    %336 = vrot.lane.b32.xlu0 %v213, 1
    %v337 = vpop.permute.xlu0 %336
    %vm338 = vcmp.lt.s32.totalorder %v221, 1
    %v339 = vsel %vm338, %v335, %v337
    %v340 = vsel %vm338, %v337, %v335
    %341 = vrot.lane.b32.xlu0 %v214, 1
    %v342 = vpop.permute.xlu0 %341
    %343 = vrot.lane.b32.xlu0 %v215, 1
    %v344 = vpop.permute.xlu0 %343
    %v345 = vsel %vm338, %v342, %v344
    %v346 = vsel %vm338, %v344, %v342
    %vm347 = vmand %vm36, %vm42
    %v348 = vsel %vm347, 1, 0
    %v349 = vlaneseq
    %v350 = vshrl.u32 %v349, 7
    %v351 = vsub.s32 0, %v350
    %v352 = vrot.slane %v348, %v351
    %v353 = vlaneseq
    %v354 = vshrl.u32 %v353, 7
    %v355 = vsub.s32 1, %v354
    %v356 = vrot.slane %v348, %v355
    %vm357 = vcmp.eq.s32.totalorder %v352, 1
    %vm358 = vcmp.eq.s32.totalorder %v356, 1
    %v359 = vsel %vm357, %v340, 0.0
    %v360 = vsel %vm358, %v339, 0.0
    %v361 = vsel %vm357, %v346, 0.0
    %v362 = vsel %vm358, %v345, 0.0
    %363 = vset.pattern.permute.xlu0 3
    %364 = vperm.xlu0 %363, %v27
    %v365 = vpop.permute.xlu0 %364
    %v367 = vadd.f32 %v359, %v365
    %v368 = vadd.f32 %v360, %v365
    %v369 = vmul.f32 %v210, %v367
    %v370 = vmul.f32 %v211, %v368
    %v371 = vmax.f32 %v332, %v369
    %v372 = vmax.f32 %v333, %v370
    %vm373 = vmand %vm36, %vm45
    %v374 = vsel %vm373, 1, 0
    %v375 = vlaneseq
    %v376 = vshrl.u32 %v375, 7
    %v377 = vsub.s32 0, %v376
    %v378 = vrot.slane %v374, %v377
    %v379 = vlaneseq
    %v380 = vshrl.u32 %v379, 7
    %v381 = vsub.s32 1, %v380
    %v382 = vrot.slane %v374, %v381
    %vm383 = vcmp.eq.s32.totalorder %v378, 1
    %vm384 = vcmp.eq.s32.totalorder %v382, 1
    %v385 = vsel %vm383, %v212, 0.0
    %v386 = vsel %vm384, %v213, 0.0
    %v387 = vsel %vm383, %v214, 0.0
    %v388 = vsel %vm384, %v215, 0.0
    %389 = vset.pattern.permute.xlu0 4
    %390 = vperm.xlu0 %389, %v27
    %v391 = vpop.permute.xlu0 %390
    %v393 = vadd.f32 %v385, %v391
    %v394 = vadd.f32 %v386, %v391
    %v395 = vmul.f32 %v210, %v393
    %v396 = vmul.f32 %v211, %v394
    %v397 = vmax.f32 %v371, %v395
    %v398 = vmax.f32 %v372, %v396
    %399 = vrot.lane.b32.xlu0 %v212, 127
    %v400 = vpop.permute.xlu0 %399
    %401 = vrot.lane.b32.xlu0 %v213, 127
    %v402 = vpop.permute.xlu0 %401
    %vm403 = vcmp.lt.s32.totalorder %v221, 127
    %v404 = vsel %vm403, %v400, %v402
    %v405 = vsel %vm403, %v402, %v400
    %406 = vrot.lane.b32.xlu0 %v214, 127
    %v407 = vpop.permute.xlu0 %406
    %408 = vrot.lane.b32.xlu0 %v215, 127
    %v409 = vpop.permute.xlu0 %408
    %v410 = vsel %vm403, %v407, %v409
    %v411 = vsel %vm403, %v409, %v407
    %vm412 = vmand %vm36, %vm48
    %v413 = vsel %vm412, 1, 0
    %v414 = vlaneseq
    %v415 = vshrl.u32 %v414, 7
    %v416 = vsub.s32 0, %v415
    %v417 = vrot.slane %v413, %v416
    %v418 = vlaneseq
    %v419 = vshrl.u32 %v418, 7
    %v420 = vsub.s32 1, %v419
    %v421 = vrot.slane %v413, %v420
    %vm422 = vcmp.eq.s32.totalorder %v417, 1
    %vm423 = vcmp.eq.s32.totalorder %v421, 1
    %v424 = vsel %vm422, %v404, 0.0
    %v425 = vsel %vm423, %v405, 0.0
    %v426 = vsel %vm422, %v410, 0.0
    %v427 = vsel %vm423, %v411, 0.0
    %428 = vset.pattern.permute.xlu0 5
    %429 = vperm.xlu0 %428, %v27
    %v430 = vpop.permute.xlu0 %429
    %v432 = vadd.f32 %v424, %v430
    %v433 = vadd.f32 %v425, %v430
    %v434 = vmul.f32 %v210, %v432
    %v435 = vmul.f32 %v211, %v433
    %v436 = vmax.f32 %v397, %v434
    %v437 = vmax.f32 %v398, %v435
    %438 = vrot.lane.b32.xlu0 %v212, 113
    %v439 = vpop.permute.xlu0 %438
    %440 = vrot.lane.b32.xlu0 %v213, 113
    %v441 = vpop.permute.xlu0 %440
    %vm442 = vcmp.lt.s32.totalorder %v221, 113
    %v443 = vsel %vm442, %v439, %v441
    %v444 = vsel %vm442, %v441, %v439
    %445 = vrot.lane.b32.xlu0 %v214, 113
    %v446 = vpop.permute.xlu0 %445
    %447 = vrot.lane.b32.xlu0 %v215, 113
    %v448 = vpop.permute.xlu0 %447
    %v449 = vsel %vm442, %v446, %v448
    %v450 = vsel %vm442, %v448, %v446
    %vm451 = vmand %vm39, %vm42
    %v452 = vsel %vm451, 1, 0
    %v453 = vlaneseq
    %v454 = vshrl.u32 %v453, 7
    %v455 = vsub.s32 0, %v454
    %v456 = vrot.slane %v452, %v455
    %v457 = vlaneseq
    %v458 = vshrl.u32 %v457, 7
    %v459 = vsub.s32 1, %v458
    %v460 = vrot.slane %v452, %v459
    %vm461 = vcmp.eq.s32.totalorder %v456, 1
    %vm462 = vcmp.eq.s32.totalorder %v460, 1
    %v463 = vsel %vm461, %v443, 0.0
    %v464 = vsel %vm462, %v444, 0.0
    %v465 = vsel %vm461, %v449, 0.0
    %v466 = vsel %vm462, %v450, 0.0
    %467 = vset.pattern.permute.xlu0 6
    %468 = vperm.xlu0 %467, %v27
    %v469 = vpop.permute.xlu0 %468
    %v471 = vadd.f32 %v463, %v469
    %v472 = vadd.f32 %v464, %v469
    %v473 = vmul.f32 %v210, %v471
    %v474 = vmul.f32 %v211, %v472
    %v475 = vmax.f32 %v436, %v473
    %v476 = vmax.f32 %v437, %v474
    %477 = vrot.lane.b32.xlu0 %v212, 112
    %v478 = vpop.permute.xlu0 %477
    %479 = vrot.lane.b32.xlu0 %v213, 112
    %v480 = vpop.permute.xlu0 %479
    %vm481 = vcmp.lt.s32.totalorder %v221, 112
    %v482 = vsel %vm481, %v478, %v480
    %v483 = vsel %vm481, %v480, %v478
    %484 = vrot.lane.b32.xlu0 %v214, 112
    %v485 = vpop.permute.xlu0 %484
    %486 = vrot.lane.b32.xlu0 %v215, 112
    %v487 = vpop.permute.xlu0 %486
    %v488 = vsel %vm481, %v485, %v487
    %v489 = vsel %vm481, %v487, %v485
    %vm490 = vmand %vm39, %vm45
    %v491 = vsel %vm490, 1, 0
    %v492 = vlaneseq
    %v493 = vshrl.u32 %v492, 7
    %v494 = vsub.s32 0, %v493
    %v495 = vrot.slane %v491, %v494
    %v496 = vlaneseq
    %v497 = vshrl.u32 %v496, 7
    %v498 = vsub.s32 1, %v497
    %v499 = vrot.slane %v491, %v498
    %vm500 = vcmp.eq.s32.totalorder %v495, 1
    %vm501 = vcmp.eq.s32.totalorder %v499, 1
    %v502 = vsel %vm500, %v482, 0.0
    %v503 = vsel %vm501, %v483, 0.0
    %v504 = vsel %vm500, %v488, 0.0
    %v505 = vsel %vm501, %v489, 0.0
    %506 = vset.pattern.permute.xlu0 7
    %507 = vperm.xlu0 %506, %v27
    %v508 = vpop.permute.xlu0 %507
    %v510 = vadd.f32 %v502, %v508
    %v511 = vadd.f32 %v503, %v508
    %v512 = vmul.f32 %v210, %v510
    %v513 = vmul.f32 %v211, %v511
    %v514 = vmax.f32 %v475, %v512
    %v515 = vmax.f32 %v476, %v513
    %516 = vrot.lane.b32.xlu0 %v212, 111
    %v517 = vpop.permute.xlu0 %516
    %518 = vrot.lane.b32.xlu0 %v213, 111
    %v519 = vpop.permute.xlu0 %518
    %vm520 = vcmp.lt.s32.totalorder %v221, 111
    %v521 = vsel %vm520, %v517, %v519
    %v522 = vsel %vm520, %v519, %v517
    %523 = vrot.lane.b32.xlu0 %v214, 111
    %v524 = vpop.permute.xlu0 %523
    %525 = vrot.lane.b32.xlu0 %v215, 111
    %v526 = vpop.permute.xlu0 %525
    %v527 = vsel %vm520, %v524, %v526
    %v528 = vsel %vm520, %v526, %v524
    %vm529 = vmand %vm39, %vm48
    %v530 = vsel %vm529, 1, 0
    %v531 = vlaneseq
    %v532 = vshrl.u32 %v531, 7
    %v533 = vsub.s32 0, %v532
    %v534 = vrot.slane %v530, %v533
    %v535 = vlaneseq
    %v536 = vshrl.u32 %v535, 7
    %v537 = vsub.s32 1, %v536
    %v538 = vrot.slane %v530, %v537
    %vm539 = vcmp.eq.s32.totalorder %v534, 1
    %vm540 = vcmp.eq.s32.totalorder %v538, 1
    %v541 = vsel %vm539, %v521, 0.0
    %v542 = vsel %vm540, %v522, 0.0
    %v543 = vsel %vm539, %v527, 0.0
    %v544 = vsel %vm540, %v528, 0.0
    %545 = vset.pattern.permute.xlu0 8
    %546 = vperm.xlu0 %545, %v27
    %v547 = vpop.permute.xlu0 %546
    %v549 = vadd.f32 %v541, %v547
    %v550 = vadd.f32 %v542, %v547
    %v551 = vmul.f32 %v210, %v549
    %v552 = vmul.f32 %v211, %v550
    %v553 = vmax.f32 %v514, %v551
    %v554 = vmax.f32 %v515, %v552
    %v555 = vsub.f32 %v254, %v553
    %v556 = vsub.f32 %v255, %v554
    %v557 = vmul.f32 %v555, 1.442695
    %v558 = vpow.pop %v557
    %v559 = vmul.f32 %v556, 1.442695
    %v560 = vpow.pop %v559
    %v561 = vmul.f32 %v558, %v245
    %v562 = vmul.f32 %v560, %v246
    %v563 = vsub.f32 %v291, %v553
    %v564 = vsub.f32 %v292, %v554
    %v565 = vmul.f32 %v563, 1.442695
    %v566 = vpow.pop %v565
    %v567 = vmul.f32 %v564, 1.442695
    %v568 = vpow.pop %v567
    %v569 = vmul.f32 %v566, %v283
    %v570 = vmul.f32 %v568, %v284
    %v571 = vadd.f32 %v558, %v566
    %v572 = vadd.f32 %v560, %v568
    %v573 = vadd.f32 %v561, %v569
    %v574 = vadd.f32 %v562, %v570
    %v575 = vsub.f32 %v330, %v553
    %v576 = vsub.f32 %v331, %v554
    %v577 = vmul.f32 %v575, 1.442695
    %v578 = vpow.pop %v577
    %v579 = vmul.f32 %v576, 1.442695
    %v580 = vpow.pop %v579
    %v581 = vmul.f32 %v578, %v322
    %v582 = vmul.f32 %v580, %v323
    %v583 = vadd.f32 %v571, %v578
    %v584 = vadd.f32 %v572, %v580
    %v585 = vadd.f32 %v573, %v581
    %v586 = vadd.f32 %v574, %v582
    %v587 = vsub.f32 %v369, %v553
    %v588 = vsub.f32 %v370, %v554
    %v589 = vmul.f32 %v587, 1.442695
    %v590 = vpow.pop %v589
    %v591 = vmul.f32 %v588, 1.442695
    %v592 = vpow.pop %v591
    %v593 = vmul.f32 %v590, %v361
    %v594 = vmul.f32 %v592, %v362
    %v595 = vadd.f32 %v583, %v590
    %v596 = vadd.f32 %v584, %v592
    %v597 = vadd.f32 %v585, %v593
    %v598 = vadd.f32 %v586, %v594
    %v599 = vsub.f32 %v395, %v553
    %v600 = vsub.f32 %v396, %v554
    %v601 = vmul.f32 %v599, 1.442695
    %v602 = vpow.pop %v601
    %v603 = vmul.f32 %v600, 1.442695
    %v604 = vpow.pop %v603
    %v605 = vmul.f32 %v602, %v387
    %v606 = vmul.f32 %v604, %v388
    %v607 = vadd.f32 %v595, %v602
    %v608 = vadd.f32 %v596, %v604
    %v609 = vadd.f32 %v597, %v605
    %v610 = vadd.f32 %v598, %v606
    %v611 = vsub.f32 %v434, %v553
    %v612 = vsub.f32 %v435, %v554
    %v613 = vmul.f32 %v611, 1.442695
    %v614 = vpow.pop %v613
    %v615 = vmul.f32 %v612, 1.442695
    %v616 = vpow.pop %v615
    %v617 = vmul.f32 %v614, %v426
    %v618 = vmul.f32 %v616, %v427
    %v619 = vadd.f32 %v607, %v614
    %v620 = vadd.f32 %v608, %v616
    %v621 = vadd.f32 %v609, %v617
    %v622 = vadd.f32 %v610, %v618
    %v623 = vsub.f32 %v473, %v553
    %v624 = vsub.f32 %v474, %v554
    %v625 = vmul.f32 %v623, 1.442695
    %v626 = vpow.pop %v625
    %v627 = vmul.f32 %v624, 1.442695
    %v628 = vpow.pop %v627
    %v629 = vmul.f32 %v626, %v465
    %v630 = vmul.f32 %v628, %v466
    %v631 = vadd.f32 %v619, %v626
    %v632 = vadd.f32 %v620, %v628
    %v633 = vadd.f32 %v621, %v629
    %v634 = vadd.f32 %v622, %v630
    %v635 = vsub.f32 %v512, %v553
    %v636 = vsub.f32 %v513, %v554
    %v637 = vmul.f32 %v635, 1.442695
    %v638 = vpow.pop %v637
    %v639 = vmul.f32 %v636, 1.442695
    %v640 = vpow.pop %v639
    %v641 = vmul.f32 %v638, %v504
    %v642 = vmul.f32 %v640, %v505
    %v643 = vadd.f32 %v631, %v638
    %v644 = vadd.f32 %v632, %v640
    %v645 = vadd.f32 %v633, %v641
    %v646 = vadd.f32 %v634, %v642
    %v647 = vsub.f32 %v551, %v553
    %v648 = vsub.f32 %v552, %v554
    %v649 = vmul.f32 %v647, 1.442695
    %v650 = vpow.pop %v649
    %v651 = vmul.f32 %v648, 1.442695
    %v652 = vpow.pop %v651
    %v653 = vmul.f32 %v650, %v543
    %v654 = vmul.f32 %v652, %v544
    %v655 = vadd.f32 %v643, %v650
    %v656 = vadd.f32 %v644, %v652
    %v657 = vadd.f32 %v645, %v653
    %v658 = vadd.f32 %v646, %v654
    %v659 = vrcp.pop %v655
    %v660 = vrcp.pop %v656
    %v661 = vmul.f32 %v655, %v659
    %v662 = vmul.f32 %v656, %v660
    %v663 = vsub.f32 2.0, %v661
    %v664 = vsub.f32 2.0, %v662
    %v665 = vmul.f32 %v659, %v663
    %v666 = vmul.f32 %v660, %v664
    %v667 = vmul.f32 %v657, %v665
    %v668 = vmul.f32 %v658, %v666
    %669 = vst [vmem:[#allocation2] sm:$0xff] %v667
    %670 = vst [vmem:[#allocation2 + $0x8] sm:$0xff] %v668
    %s671 = scalar_lea.vmem %s0, 8
    %v672 = vld [vmem:[%s671] sm:$0xff]
    %v674 = vlaneseq
    %v675 = vshrl.u32 %v674, 7
    %v676 = vsub.s32 0, %v675
    %v677 = vrot.slane %v672, %v676
    %v678 = vlaneseq
    %v679 = vshrl.u32 %v678, 7
    %v680 = vsub.s32 4, %v679
    %v681 = vrot.slane %v672, %v680
    %v684 = vlaneseq
    %v685 = vshrl.u32 %v684, 7
    %v686 = vsub.s32 0, %v685
    %v687 = vrot.slane %v677, %v686
    %v688 = vlaneseq
    %v689 = vshrl.u32 %v688, 7
    %v690 = vsub.s32 0, %v689
    %v691 = vrot.slane %v681, %v690
    %v692 = vmul.f32 %v53, %v687
    %v693 = vmul.f32 %v53, %v691
    %v694 = vmul.f32 %v79, %v687
    %v695 = vmul.f32 %v79, %v691
    %v696 = vmul.f32 %v86, %v687
    %v697 = vmul.f32 %v86, %v691
    %v698 = vlaneseq
    %v699 = vshrl.u32 %v698, 7
    %v700 = vsub.s32 1, %v699
    %v701 = vrot.slane %v672, %v700
    %v702 = vlaneseq
    %v703 = vshrl.u32 %v702, 7
    %v704 = vsub.s32 5, %v703
    %v705 = vrot.slane %v672, %v704
    %v708 = vlaneseq
    %v709 = vshrl.u32 %v708, 7
    %v710 = vsub.s32 1, %v709
    %v711 = vrot.slane %v701, %v710
    %v712 = vlaneseq
    %v713 = vshrl.u32 %v712, 7
    %v714 = vsub.s32 1, %v713
    %v715 = vrot.slane %v705, %v714
    %v716 = vmul.f32 %v92, %v711
    %v717 = vmul.f32 %v92, %v715
    %v718 = vmul.f32 %v116, %v711
    %v719 = vmul.f32 %v116, %v715
    %v720 = vmul.f32 %v122, %v711
    %v721 = vmul.f32 %v122, %v715
    %v722 = vadd.f32 %v692, %v716
    %v723 = vadd.f32 %v693, %v717
    %v724 = vadd.f32 %v694, %v718
    %v725 = vadd.f32 %v695, %v719
    %v726 = vadd.f32 %v696, %v720
    %v727 = vadd.f32 %v697, %v721
    %v728 = vlaneseq
    %v729 = vshrl.u32 %v728, 7
    %v730 = vsub.s32 2, %v729
    %v731 = vrot.slane %v672, %v730
    %v732 = vlaneseq
    %v733 = vshrl.u32 %v732, 7
    %v734 = vsub.s32 6, %v733
    %v735 = vrot.slane %v672, %v734
    %v738 = vlaneseq
    %v739 = vshrl.u32 %v738, 7
    %v740 = vsub.s32 2, %v739
    %v741 = vrot.slane %v731, %v740
    %v742 = vlaneseq
    %v743 = vshrl.u32 %v742, 7
    %v744 = vsub.s32 2, %v743
    %v745 = vrot.slane %v735, %v744
    %v746 = vmul.f32 %v134, %v741
    %v747 = vmul.f32 %v134, %v745
    %v748 = vmul.f32 %v158, %v741
    %v749 = vmul.f32 %v158, %v745
    %v750 = vmul.f32 %v164, %v741
    %v751 = vmul.f32 %v164, %v745
    %v752 = vadd.f32 %v722, %v746
    %v753 = vadd.f32 %v723, %v747
    %v754 = vadd.f32 %v724, %v748
    %v755 = vadd.f32 %v725, %v749
    %v756 = vadd.f32 %v726, %v750
    %v757 = vadd.f32 %v727, %v751
    %v758 = vlaneseq
    %v759 = vshrl.u32 %v758, 7
    %v760 = vsub.s32 3, %v759
    %v761 = vrot.slane %v672, %v760
    %v762 = vlaneseq
    %v763 = vshrl.u32 %v762, 7
    %v764 = vsub.s32 7, %v763
    %v765 = vrot.slane %v672, %v764
    %v768 = vlaneseq
    %v769 = vshrl.u32 %v768, 7
    %v770 = vsub.s32 3, %v769
    %v771 = vrot.slane %v761, %v770
    %v772 = vlaneseq
    %v773 = vshrl.u32 %v772, 7
    %v774 = vsub.s32 3, %v773
    %v775 = vrot.slane %v765, %v774
    %v776 = vmul.f32 %v176, %v771
    %v777 = vmul.f32 %v176, %v775
    %v778 = vmul.f32 %v200, %v771
    %v779 = vmul.f32 %v200, %v775
    %v780 = vmul.f32 %v206, %v771
    %v781 = vmul.f32 %v206, %v775
    %v782 = vadd.f32 %v752, %v776
    %v783 = vadd.f32 %v753, %v777
    %v784 = vadd.f32 %v754, %v778
    %v785 = vadd.f32 %v755, %v779
    %v786 = vadd.f32 %v756, %v780
    %v787 = vadd.f32 %v757, %v781
    %788 = vrot.lane.b32.xlu0 %v784, 17
    %v789 = vpop.permute.xlu0 %788
    %790 = vrot.lane.b32.xlu0 %v785, 17
    %v791 = vpop.permute.xlu0 %790
    %v792 = vsel %vm222, %v789, %v791
    %v793 = vsel %vm222, %v791, %v789
    %794 = vrot.lane.b32.xlu0 %v786, 17
    %v795 = vpop.permute.xlu0 %794
    %796 = vrot.lane.b32.xlu0 %v787, 17
    %v797 = vpop.permute.xlu0 %796
    %v798 = vsel %vm222, %v795, %v797
    %v799 = vsel %vm222, %v797, %v795
    %v800 = vsel %vm241, %v793, 0.0
    %v801 = vsel %vm242, %v792, 0.0
    %v802 = vsel %vm241, %v799, 0.0
    %v803 = vsel %vm242, %v798, 0.0
    %v804 = vadd.f32 %v800, %v250
    %v805 = vadd.f32 %v801, %v250
    %v806 = vmul.f32 %v782, %v804
    %v807 = vmul.f32 %v783, %v805
    %808 = vrot.lane.b32.xlu0 %v784, 16
    %v809 = vpop.permute.xlu0 %808
    %810 = vrot.lane.b32.xlu0 %v785, 16
    %v811 = vpop.permute.xlu0 %810
    %v812 = vsel %vm260, %v809, %v811
    %v813 = vsel %vm260, %v811, %v809
    %814 = vrot.lane.b32.xlu0 %v786, 16
    %v815 = vpop.permute.xlu0 %814
    %816 = vrot.lane.b32.xlu0 %v787, 16
    %v817 = vpop.permute.xlu0 %816
    %v818 = vsel %vm260, %v815, %v817
    %v819 = vsel %vm260, %v817, %v815
    %v820 = vsel %vm279, %v813, 0.0
    %v821 = vsel %vm280, %v812, 0.0
    %v822 = vsel %vm279, %v819, 0.0
    %v823 = vsel %vm280, %v818, 0.0
    %v824 = vadd.f32 %v820, %v287
    %v825 = vadd.f32 %v821, %v287
    %v826 = vmul.f32 %v782, %v824
    %v827 = vmul.f32 %v783, %v825
    %v828 = vmax.f32 %v806, %v826
    %v829 = vmax.f32 %v807, %v827
    %830 = vrot.lane.b32.xlu0 %v784, 15
    %v831 = vpop.permute.xlu0 %830
    %832 = vrot.lane.b32.xlu0 %v785, 15
    %v833 = vpop.permute.xlu0 %832
    %v834 = vsel %vm299, %v831, %v833
    %v835 = vsel %vm299, %v833, %v831
    %836 = vrot.lane.b32.xlu0 %v786, 15
    %v837 = vpop.permute.xlu0 %836
    %838 = vrot.lane.b32.xlu0 %v787, 15
    %v839 = vpop.permute.xlu0 %838
    %v840 = vsel %vm299, %v837, %v839
    %v841 = vsel %vm299, %v839, %v837
    %v842 = vsel %vm318, %v835, 0.0
    %v843 = vsel %vm319, %v834, 0.0
    %v844 = vsel %vm318, %v841, 0.0
    %v845 = vsel %vm319, %v840, 0.0
    %v846 = vadd.f32 %v842, %v326
    %v847 = vadd.f32 %v843, %v326
    %v848 = vmul.f32 %v782, %v846
    %v849 = vmul.f32 %v783, %v847
    %v850 = vmax.f32 %v828, %v848
    %v851 = vmax.f32 %v829, %v849
    %852 = vrot.lane.b32.xlu0 %v784, 1
    %v853 = vpop.permute.xlu0 %852
    %854 = vrot.lane.b32.xlu0 %v785, 1
    %v855 = vpop.permute.xlu0 %854
    %v856 = vsel %vm338, %v853, %v855
    %v857 = vsel %vm338, %v855, %v853
    %858 = vrot.lane.b32.xlu0 %v786, 1
    %v859 = vpop.permute.xlu0 %858
    %860 = vrot.lane.b32.xlu0 %v787, 1
    %v861 = vpop.permute.xlu0 %860
    %v862 = vsel %vm338, %v859, %v861
    %v863 = vsel %vm338, %v861, %v859
    %v864 = vsel %vm357, %v857, 0.0
    %v865 = vsel %vm358, %v856, 0.0
    %v866 = vsel %vm357, %v863, 0.0
    %v867 = vsel %vm358, %v862, 0.0
    %v868 = vadd.f32 %v864, %v365
    %v869 = vadd.f32 %v865, %v365
    %v870 = vmul.f32 %v782, %v868
    %v871 = vmul.f32 %v783, %v869
    %v872 = vmax.f32 %v850, %v870
    %v873 = vmax.f32 %v851, %v871
    %v874 = vsel %vm383, %v784, 0.0
    %v875 = vsel %vm384, %v785, 0.0
    %v876 = vsel %vm383, %v786, 0.0
    %v877 = vsel %vm384, %v787, 0.0
    %v878 = vadd.f32 %v874, %v391
    %v879 = vadd.f32 %v875, %v391
    %v880 = vmul.f32 %v782, %v878
    %v881 = vmul.f32 %v783, %v879
    %v882 = vmax.f32 %v872, %v880
    %v883 = vmax.f32 %v873, %v881
    %884 = vrot.lane.b32.xlu0 %v784, 127
    %v885 = vpop.permute.xlu0 %884
    %886 = vrot.lane.b32.xlu0 %v785, 127
    %v887 = vpop.permute.xlu0 %886
    %v888 = vsel %vm403, %v885, %v887
    %v889 = vsel %vm403, %v887, %v885
    %890 = vrot.lane.b32.xlu0 %v786, 127
    %v891 = vpop.permute.xlu0 %890
    %892 = vrot.lane.b32.xlu0 %v787, 127
    %v893 = vpop.permute.xlu0 %892
    %v894 = vsel %vm403, %v891, %v893
    %v895 = vsel %vm403, %v893, %v891
    %v896 = vsel %vm422, %v888, 0.0
    %v897 = vsel %vm423, %v889, 0.0
    %v898 = vsel %vm422, %v894, 0.0
    %v899 = vsel %vm423, %v895, 0.0
    %v900 = vadd.f32 %v896, %v430
    %v901 = vadd.f32 %v897, %v430
    %v902 = vmul.f32 %v782, %v900
    %v903 = vmul.f32 %v783, %v901
    %v904 = vmax.f32 %v882, %v902
    %v905 = vmax.f32 %v883, %v903
    %906 = vrot.lane.b32.xlu0 %v784, 113
    %v907 = vpop.permute.xlu0 %906
    %908 = vrot.lane.b32.xlu0 %v785, 113
    %v909 = vpop.permute.xlu0 %908
    %v910 = vsel %vm442, %v907, %v909
    %v911 = vsel %vm442, %v909, %v907
    %912 = vrot.lane.b32.xlu0 %v786, 113
    %v913 = vpop.permute.xlu0 %912
    %914 = vrot.lane.b32.xlu0 %v787, 113
    %v915 = vpop.permute.xlu0 %914
    %v916 = vsel %vm442, %v913, %v915
    %v917 = vsel %vm442, %v915, %v913
    %v918 = vsel %vm461, %v910, 0.0
    %v919 = vsel %vm462, %v911, 0.0
    %v920 = vsel %vm461, %v916, 0.0
    %v921 = vsel %vm462, %v917, 0.0
    %v922 = vadd.f32 %v918, %v469
    %v923 = vadd.f32 %v919, %v469
    %v924 = vmul.f32 %v782, %v922
    %v925 = vmul.f32 %v783, %v923
    %v926 = vmax.f32 %v904, %v924
    %v927 = vmax.f32 %v905, %v925
    %928 = vrot.lane.b32.xlu0 %v784, 112
    %v929 = vpop.permute.xlu0 %928
    %930 = vrot.lane.b32.xlu0 %v785, 112
    %v931 = vpop.permute.xlu0 %930
    %v932 = vsel %vm481, %v929, %v931
    %v933 = vsel %vm481, %v931, %v929
    %934 = vrot.lane.b32.xlu0 %v786, 112
    %v935 = vpop.permute.xlu0 %934
    %936 = vrot.lane.b32.xlu0 %v787, 112
    %v937 = vpop.permute.xlu0 %936
    %v938 = vsel %vm481, %v935, %v937
    %v939 = vsel %vm481, %v937, %v935
    %v940 = vsel %vm500, %v932, 0.0
    %v941 = vsel %vm501, %v933, 0.0
    %v942 = vsel %vm500, %v938, 0.0
    %v943 = vsel %vm501, %v939, 0.0
    %v944 = vadd.f32 %v940, %v508
    %v945 = vadd.f32 %v941, %v508
    %v946 = vmul.f32 %v782, %v944
    %v947 = vmul.f32 %v783, %v945
    %v948 = vmax.f32 %v926, %v946
    %v949 = vmax.f32 %v927, %v947
    %950 = vrot.lane.b32.xlu0 %v784, 111
    %v951 = vpop.permute.xlu0 %950
    %952 = vrot.lane.b32.xlu0 %v785, 111
    %v953 = vpop.permute.xlu0 %952
    %v954 = vsel %vm520, %v951, %v953
    %v955 = vsel %vm520, %v953, %v951
    %956 = vrot.lane.b32.xlu0 %v786, 111
    %v957 = vpop.permute.xlu0 %956
    %958 = vrot.lane.b32.xlu0 %v787, 111
    %v959 = vpop.permute.xlu0 %958
    %v960 = vsel %vm520, %v957, %v959
    %v961 = vsel %vm520, %v959, %v957
    %v962 = vsel %vm539, %v954, 0.0
    %v963 = vsel %vm540, %v955, 0.0
    %v964 = vsel %vm539, %v960, 0.0
    %v965 = vsel %vm540, %v961, 0.0
    %v966 = vadd.f32 %v962, %v547
    %v967 = vadd.f32 %v963, %v547
    %v968 = vmul.f32 %v782, %v966
    %v969 = vmul.f32 %v783, %v967
    %v970 = vmax.f32 %v948, %v968
    %v971 = vmax.f32 %v949, %v969
    %v972 = vsub.f32 %v806, %v970
    %v973 = vsub.f32 %v807, %v971
    %v974 = vmul.f32 %v972, 1.442695
    %v975 = vpow.pop %v974
    %v976 = vmul.f32 %v973, 1.442695
    %v977 = vpow.pop %v976
    %v978 = vmul.f32 %v975, %v802
    %v979 = vmul.f32 %v977, %v803
    %v980 = vsub.f32 %v826, %v970
    %v981 = vsub.f32 %v827, %v971
    %v982 = vmul.f32 %v980, 1.442695
    %v983 = vpow.pop %v982
    %v984 = vmul.f32 %v981, 1.442695
    %v985 = vpow.pop %v984
    %v986 = vmul.f32 %v983, %v822
    %v987 = vmul.f32 %v985, %v823
    %v988 = vadd.f32 %v975, %v983
    %v989 = vadd.f32 %v977, %v985
    %v990 = vadd.f32 %v978, %v986
    %v991 = vadd.f32 %v979, %v987
    %v992 = vsub.f32 %v848, %v970
    %v993 = vsub.f32 %v849, %v971
    %v994 = vmul.f32 %v992, 1.442695
    %v995 = vpow.pop %v994
    %v996 = vmul.f32 %v993, 1.442695
    %v997 = vpow.pop %v996
    %v998 = vmul.f32 %v995, %v844
    %v999 = vmul.f32 %v997, %v845
    %v1000 = vadd.f32 %v988, %v995
    %v1001 = vadd.f32 %v989, %v997
    %v1002 = vadd.f32 %v990, %v998
    %v1003 = vadd.f32 %v991, %v999
    %v1004 = vsub.f32 %v870, %v970
    %v1005 = vsub.f32 %v871, %v971
    %v1006 = vmul.f32 %v1004, 1.442695
    %v1007 = vpow.pop %v1006
    %v1008 = vmul.f32 %v1005, 1.442695
    %v1009 = vpow.pop %v1008
    %v1010 = vmul.f32 %v1007, %v866
    %v1011 = vmul.f32 %v1009, %v867
    %v1012 = vadd.f32 %v1000, %v1007
    %v1013 = vadd.f32 %v1001, %v1009
    %v1014 = vadd.f32 %v1002, %v1010
    %v1015 = vadd.f32 %v1003, %v1011
    %v1016 = vsub.f32 %v880, %v970
    %v1017 = vsub.f32 %v881, %v971
    %v1018 = vmul.f32 %v1016, 1.442695
    %v1019 = vpow.pop %v1018
    %v1020 = vmul.f32 %v1017, 1.442695
    %v1021 = vpow.pop %v1020
    %v1022 = vmul.f32 %v1019, %v876
    %v1023 = vmul.f32 %v1021, %v877
    %v1024 = vadd.f32 %v1012, %v1019
    %v1025 = vadd.f32 %v1013, %v1021
    %v1026 = vadd.f32 %v1014, %v1022
    %v1027 = vadd.f32 %v1015, %v1023
    %v1028 = vsub.f32 %v902, %v970
    %v1029 = vsub.f32 %v903, %v971
    %v1030 = vmul.f32 %v1028, 1.442695
    %v1031 = vpow.pop %v1030
    %v1032 = vmul.f32 %v1029, 1.442695
    %v1033 = vpow.pop %v1032
    %v1034 = vmul.f32 %v1031, %v898
    %v1035 = vmul.f32 %v1033, %v899
    %v1036 = vadd.f32 %v1024, %v1031
    %v1037 = vadd.f32 %v1025, %v1033
    %v1038 = vadd.f32 %v1026, %v1034
    %v1039 = vadd.f32 %v1027, %v1035
    %v1040 = vsub.f32 %v924, %v970
    %v1041 = vsub.f32 %v925, %v971
    %v1042 = vmul.f32 %v1040, 1.442695
    %v1043 = vpow.pop %v1042
    %v1044 = vmul.f32 %v1041, 1.442695
    %v1045 = vpow.pop %v1044
    %v1046 = vmul.f32 %v1043, %v920
    %v1047 = vmul.f32 %v1045, %v921
    %v1048 = vadd.f32 %v1036, %v1043
    %v1049 = vadd.f32 %v1037, %v1045
    %v1050 = vadd.f32 %v1038, %v1046
    %v1051 = vadd.f32 %v1039, %v1047
    %v1052 = vsub.f32 %v946, %v970
    %v1053 = vsub.f32 %v947, %v971
    %v1054 = vmul.f32 %v1052, 1.442695
    %v1055 = vpow.pop %v1054
    %v1056 = vmul.f32 %v1053, 1.442695
    %v1057 = vpow.pop %v1056
    %v1058 = vmul.f32 %v1055, %v942
    %v1059 = vmul.f32 %v1057, %v943
    %v1060 = vadd.f32 %v1048, %v1055
    %v1061 = vadd.f32 %v1049, %v1057
    %v1062 = vadd.f32 %v1050, %v1058
    %v1063 = vadd.f32 %v1051, %v1059
    %v1064 = vsub.f32 %v968, %v970
    %v1065 = vsub.f32 %v969, %v971
    %v1066 = vmul.f32 %v1064, 1.442695
    %v1067 = vpow.pop %v1066
    %v1068 = vmul.f32 %v1065, 1.442695
    %v1069 = vpow.pop %v1068
    %v1070 = vmul.f32 %v1067, %v964
    %v1071 = vmul.f32 %v1069, %v965
    %v1072 = vadd.f32 %v1060, %v1067
    %v1073 = vadd.f32 %v1061, %v1069
    %v1074 = vadd.f32 %v1062, %v1070
    %v1075 = vadd.f32 %v1063, %v1071
    %v1076 = vrcp.pop %v1072
    %v1077 = vrcp.pop %v1073
    %v1078 = vmul.f32 %v1072, %v1076
    %v1079 = vmul.f32 %v1073, %v1077
    %v1080 = vsub.f32 2.0, %v1078
    %v1081 = vsub.f32 2.0, %v1079
    %v1082 = vmul.f32 %v1076, %v1080
    %v1083 = vmul.f32 %v1077, %v1081
    %v1084 = vmul.f32 %v1074, %v1082
    %v1085 = vmul.f32 %v1075, %v1083
    %s1086 = scalar_lea.vmem [#allocation2], 16
    %1087 = vst [vmem:[%s1086] sm:$0xff] %v1084
    %1088 = vst [vmem:[%s1086 + $0x8] sm:$0xff] %v1085
    // Predicated region
    $region26: #{tpu_custom_call.1} parent=1 // pred_check
      _
    $region27: #{tpu_custom_call.1} parent=1 // pred_check_branch
      %1090 = sbr.rel (0) target = $region29
    $region28: #{tpu_custom_call.1} parent=1 // pred_region
      %s1092 = ssub.s32 512, 512
      %1093 = vsyncadd [#allocation3], %s1092
      %s1094 = sshll.u32 [#allocation2], 4
      %s1095 = int_to_ptr.vmem [resolvable:$true] %s1094
      %1100 = dma.vmem_to_hbm [thread:$0]  %s1095, 512, %s6, [#allocation3], 256, 256, 16
    $region29: #{tpu_custom_call.1} parent=1 // pred_fallthru
      _
    // Predicated region
    $region30: #{tpu_custom_call.1} parent=1 // pred_check
      _
    $region31: #{tpu_custom_call.1} parent=1 // pred_check_branch
      %1102 = sbr.rel (0) target = $region33
    $region32: #{tpu_custom_call.1} parent=1 // pred_region
      %1103 = dma.done [#allocation3], 512
    $region33: #{tpu_custom_call.1} parent=1 // pred_fallthru
      _
    %1104 = vsyncpa [#allocation3], 1

</llo_original>
